<compile_context>
chip_gen: v7x
topology: tpu7x:2x2x1
jax: 0.10.0
libtpu: 0.0.40
codegen_flags: <defaults>
</compile_context>

<pallas_src>
import jax
import jax.numpy as jnp
from jax.experimental import pallas as pl
from jax.experimental.pallas import tpu as pltpu

IN_DIM, H1, H2, OUT_DIM = 1536, 512, 128, 1


def mlp_kernel(x_ref, w1_ref, b1_ref, w2_ref, b2_ref, w3_ref, b3_ref, o_ref):
    # fc1 + relu: cast the x tile to bf16 on the VPU, (TM, IN) @ (IN, H1) -> f32.
    x = x_ref[...].astype(jnp.bfloat16)
    h1 = jnp.dot(x, w1_ref[...], preferred_element_type=jnp.float32)
    h1 = jnp.maximum(h1 + b1_ref[...], 0.0)
    # fc2 + relu: (TM, H1) bf16 @ (H1, H2) bf16 -> f32.
    h2 = jnp.dot(h1.astype(jnp.bfloat16), w2_ref[...],
                 preferred_element_type=jnp.float32)
    h2 = jnp.maximum(h2 + b2_ref[...], 0.0)
    # fc3 (H2 -> 1): VPU broadcast-mul + lane reduction, f32 throughout.
    out = jnp.sum(h2 * w3_ref[...], axis=-1, keepdims=True) + b3_ref[...]
    o_ref[...] = out.astype(o_ref.dtype)


def _round_up(x, m):
    return (x + m - 1) // m * m


def pack_params(params):
    """One-time packing of f32 params into the kernel's layout.

    Input layout (from init_params / a converted nn.Linear): weights as (in, out)
    f32, biases as (1, out) f32.  Output: bf16 weights for fc1/fc2, fc3 weight as
    an f32 (1, H2) row vector, biases f32.  Call once and reuse.
    """
    w1, b1, w2, b2, w3, b3 = params
    return (w1.astype(jnp.bfloat16), b1,
            w2.astype(jnp.bfloat16), b2,
            w3.reshape(H2, OUT_DIM).T.astype(jnp.float32),   # (1, H2)
            b3.reshape(1, 1).astype(jnp.float32))


def simple_model_forward(x, packed_params, *, tm=512):
    """x: (B, 1536) float32 (or bfloat16). packed_params: output of pack_params."""
    w1, b1, w2, b2, w3, b3 = packed_params
    B = x.shape[0]

    # Batch tile: sublane-aligned, capped at `tm`; for B > 128 ensure at least
    # two grid steps so both v7x TensorCores get work.
    TM = min(tm, _round_up(B, 8))
    if TM > 128:
        TM = min(TM, max(128, _round_up(pl.cdiv(B, 2), 8)))
    grid = (pl.cdiv(B, TM),)

    row = lambda shape: pl.BlockSpec(shape, lambda i: (i, 0))   # tiled over batch
    rep = lambda shape: pl.BlockSpec(shape, lambda i: (0, 0))   # VMEM-resident

    flops = 2 * B * (IN_DIM * H1 + H1 * H2 + H2 * OUT_DIM)
    bytes_accessed = int(
        B * IN_DIM * x.dtype.itemsize            # x (loaded as-is)
        + (IN_DIM * H1 + H1 * H2) * 2            # fc1/fc2 weights (bf16)
        + (H1 + H2 + H2 + 1) * 4                 # biases + fc3 row (f32)
        + B * OUT_DIM * 4                        # output (f32)
    )

    return pl.pallas_call(
        mlp_kernel,
        out_shape=jax.ShapeDtypeStruct((B, OUT_DIM), jnp.float32),
        grid=grid,
        in_specs=[
            row((TM, IN_DIM)),
            rep((IN_DIM, H1)), rep((1, H1)),
            rep((H1, H2)), rep((1, H2)),
            rep((1, H2)), rep((1, 1)),
        ],
        out_specs=row((TM, OUT_DIM)),
        compiler_params=pltpu.CompilerParams(
            dimension_semantics=("parallel",),
            vmem_limit_bytes=32 * 1024 * 1024),
        cost_estimate=pl.CostEstimate(
            flops=flops, transcendentals=0, bytes_accessed=bytes_accessed),
    )(x, w1, b1, w2, b2, w3, b3)


def init_params(key):
    # Mimic nn.Linear's uniform(-1/sqrt(fan_in), 1/sqrt(fan_in)) init, stored as
    # (in, out) = W.T relative to PyTorch's (out, in); biases as (1, out).
    ks = jax.random.split(key, 6)

    def lin(kw, kb, fan_in, fan_out):
        bound = 1.0 / jnp.sqrt(fan_in)
        w = jax.random.uniform(kw, (fan_in, fan_out), jnp.float32, -bound, bound)
        b = jax.random.uniform(kb, (1, fan_out), jnp.float32, -bound, bound)
        return w, b

    w1, b1 = lin(ks[0], ks[1], IN_DIM, H1)
    w2, b2 = lin(ks[2], ks[3], H1, H2)
    w3, b3 = lin(ks[4], ks[5], H2, OUT_DIM)
    return (w1, b1, w2, b2, w3, b3)


def reference_forward_f32(x, params):
    # Pure-f32 reference matching the PyTorch module's semantics.
    w1, b1, w2, b2, w3, b3 = params
    h = jnp.maximum(x @ w1 + b1, 0.0)
    h = jnp.maximum(h @ w2 + b2, 0.0)
    return h @ w3 + b3


def reference_forward_bf16(x, params):
    # Mirrors the kernel's numerics: bf16 operands / f32 accumulation for
    # fc1/fc2, pure-f32 fc3.
    w1, b1, w2, b2, w3, b3 = params
    h = jnp.dot(x.astype(jnp.bfloat16), w1.astype(jnp.bfloat16),
                preferred_element_type=jnp.float32)
    h = jnp.maximum(h + b1, 0.0)
    h = jnp.dot(h.astype(jnp.bfloat16), w2.astype(jnp.bfloat16),
                preferred_element_type=jnp.float32)
    h = jnp.maximum(h + b2, 0.0)
    return h @ w3 + b3


if __name__ == "__main__":
    key = jax.random.PRNGKey(0)
    k_x, k_x2, k_p = jax.random.split(key, 3)
    params = init_params(k_p)
    packed = pack_params(params)          # one-time packing, reused below

    # Small batch: single grid step, partial (8-row) tile over 8 rows.
    B = 8
    x = jax.random.normal(k_x, (B, IN_DIM), jnp.float32)
    out = jax.block_until_ready(simple_model_forward(x, packed))
    assert out.shape == (B, OUT_DIM)
    assert jnp.allclose(out, reference_forward_bf16(x, params),
                        atol=1e-2, rtol=1e-2), "mismatch vs bf16 reference"
    assert jnp.allclose(out, reference_forward_f32(x, params),
                        atol=5e-2, rtol=5e-2), "mismatch vs f32 reference"

    # Larger batch: exercises the 2-step batch grid (TM=192) with no padding.
    B2 = 384
    x2 = jax.random.normal(k_x2, (B2, IN_DIM), jnp.float32)
    out2 = jax.block_until_ready(simple_model_forward(x2, packed))
    assert out2.shape == (B2, OUT_DIM)
    assert jnp.allclose(out2, reference_forward_bf16(x2, params),
                        atol=1e-2, rtol=1e-2), "mismatch vs bf16 reference (tiled)"
    assert jnp.allclose(out2, reference_forward_f32(x2, params),
                        atol=5e-2, rtol=5e-2), "mismatch vs f32 reference (tiled)"

    print("KERNEL_OK")
</pallas_src>

<mosaic_0001>
module attributes {stable_mosaic.version = 11 : i64} {
  func.func @mlp_kernel(%arg0: i32, %arg1: memref<8x1536xf32, #tpu.memory_space<vmem>>, %arg2: memref<1536x512xbf16, #tpu.memory_space<vmem>>, %arg3: memref<1x512xf32, #tpu.memory_space<vmem>>, %arg4: memref<512x128xbf16, #tpu.memory_space<vmem>>, %arg5: memref<1x128xf32, #tpu.memory_space<vmem>>, %arg6: memref<1x128xf32, #tpu.memory_space<vmem>>, %arg7: memref<1x1xf32, #tpu.memory_space<vmem>>, %arg8: memref<8x1xf32, #tpu.memory_space<vmem>>) attributes {dimension_semantics = [#tpu.dimension_semantics<parallel>], iteration_bounds = array<i64: 1>, scalar_prefetch = 0 : i64, scratch_operands = 0 : i64, tpu.core_type = #tpu.core_type<tc>, window_params = [{transform_indices = @transform_0, window_bounds = array<i64: 8, 1536>}, {pipeline_mode = #tpu.pipeline_mode<synchronous>, transform_indices = @transform_1, window_bounds = array<i64: 1536, 512>}, {pipeline_mode = #tpu.pipeline_mode<synchronous>, transform_indices = @transform_2, window_bounds = array<i64: 1, 512>}, {pipeline_mode = #tpu.pipeline_mode<synchronous>, transform_indices = @transform_3, window_bounds = array<i64: 512, 128>}, {pipeline_mode = #tpu.pipeline_mode<synchronous>, transform_indices = @transform_4, window_bounds = array<i64: 1, 128>}, {pipeline_mode = #tpu.pipeline_mode<synchronous>, transform_indices = @transform_5, window_bounds = array<i64: 1, 128>}, {pipeline_mode = #tpu.pipeline_mode<synchronous>, transform_indices = @transform_6, window_bounds = array<i64: 1, 1>}, {transform_indices = @transform_7, window_bounds = array<i64: 8, 1>}]} {
    %c0 = arith.constant 0 : index
    %c0_0 = arith.constant 0 : index
    %0 = vector.load %arg1[%c0, %c0_0] : memref<8x1536xf32, #tpu.memory_space<vmem>>, vector<8x1536xf32>
    %1 = arith.truncf %0 : vector<8x1536xf32> to vector<8x1536xbf16>
    %c0_1 = arith.constant 0 : index
    %c0_2 = arith.constant 0 : index
    %2 = vector.load %arg2[%c0_1, %c0_2] : memref<1536x512xbf16, #tpu.memory_space<vmem>>, vector<1536x512xbf16>
    %cst = arith.constant dense<0.000000e+00> : vector<8x512xf32>
    %3 = tpu.matmul %1, %2, %cst {dimension_numbers = #tpu.dot_dimension_numbers<[1], [0], [0], [1], [0, 0, 1, 1], [], []>} : vector<8x1536xbf16>, vector<1536x512xbf16>, vector<8x512xf32> -> vector<8x512xf32>
    %c0_3 = arith.constant 0 : index
    %c0_4 = arith.constant 0 : index
    %4 = vector.load %arg3[%c0_3, %c0_4] : memref<1x512xf32, #tpu.memory_space<vmem>>, vector<1x512xf32>
    %5 = vector.broadcast %4 : vector<1x512xf32> to vector<8x512xf32>
    %6 = arith.addf %3, %5 : vector<8x512xf32>
    %cst_5 = arith.constant 0.000000e+00 : f32
    %7 = vector.broadcast %cst_5 : f32 to vector<8x512xf32>
    %8 = arith.maximumf %6, %7 : vector<8x512xf32>
    %9 = arith.truncf %8 : vector<8x512xf32> to vector<8x512xbf16>
    %c0_6 = arith.constant 0 : index
    %c0_7 = arith.constant 0 : index
    %10 = vector.load %arg4[%c0_6, %c0_7] : memref<512x128xbf16, #tpu.memory_space<vmem>>, vector<512x128xbf16>
    %cst_8 = arith.constant dense<0.000000e+00> : vector<8x128xf32>
    %11 = tpu.matmul %9, %10, %cst_8 {dimension_numbers = #tpu.dot_dimension_numbers<[1], [0], [0], [1], [0, 0, 1, 1], [], []>} : vector<8x512xbf16>, vector<512x128xbf16>, vector<8x128xf32> -> vector<8x128xf32>
    %c0_9 = arith.constant 0 : index
    %c0_10 = arith.constant 0 : index
    %12 = vector.load %arg5[%c0_9, %c0_10] : memref<1x128xf32, #tpu.memory_space<vmem>>, vector<1x128xf32>
    %13 = vector.broadcast %12 : vector<1x128xf32> to vector<8x128xf32>
    %14 = arith.addf %11, %13 : vector<8x128xf32>
    %cst_11 = arith.constant 0.000000e+00 : f32
    %15 = vector.broadcast %cst_11 : f32 to vector<8x128xf32>
    %16 = arith.maximumf %14, %15 : vector<8x128xf32>
    %c0_12 = arith.constant 0 : index
    %c0_13 = arith.constant 0 : index
    %17 = vector.load %arg6[%c0_12, %c0_13] : memref<1x128xf32, #tpu.memory_space<vmem>>, vector<1x128xf32>
    %18 = vector.broadcast %17 : vector<1x128xf32> to vector<8x128xf32>
    %19 = arith.mulf %16, %18 : vector<8x128xf32>
    %cst_14 = arith.constant dense<0.000000e+00> : vector<8xf32>
    %20 = vector.multi_reduction <add>, %19, %cst_14 [1] : vector<8x128xf32> to vector<8xf32>
    %21 = vector.shape_cast %20 : vector<8xf32> to vector<8x1xf32>
    %c0_15 = arith.constant 0 : index
    %c0_16 = arith.constant 0 : index
    %22 = vector.load %arg7[%c0_15, %c0_16] : memref<1x1xf32, #tpu.memory_space<vmem>>, vector<1x1xf32>
    %23 = vector.broadcast %22 : vector<1x1xf32> to vector<8x1xf32>
    %24 = arith.addf %21, %23 : vector<8x1xf32>
    %c0_17 = arith.constant 0 : index
    %c0_18 = arith.constant 0 : index
    %25 = vector.load %arg8[%c0_17, %c0_18] : memref<8x1xf32, #tpu.memory_space<vmem>>, vector<8x1xf32>
    tpu.vector_store %arg8[%c0_17, %c0_18], %24 {strides = array<i32>} : memref<8x1xf32, #tpu.memory_space<vmem>>, vector<8x1xf32>,
    return
  }
  func.func @transform_0(%arg0: i32) -> (i32, i32) {
    %c0_i32 = arith.constant 0 : i32
    %c0_i32_0 = arith.constant 0 : i32
    return %arg0, %c0_i32 : i32, i32
  }
  func.func @transform_1(%arg0: i32) -> (i32, i32) {
    %c0_i32 = arith.constant 0 : i32
    %c0_i32_0 = arith.constant 0 : i32
    %c0_i32_1 = arith.constant 0 : i32
    return %c0_i32, %c0_i32_0 : i32, i32
  }
  func.func @transform_2(%arg0: i32) -> (i32, i32) {
    %c0_i32 = arith.constant 0 : i32
    %c0_i32_0 = arith.constant 0 : i32
    %c0_i32_1 = arith.constant 0 : i32
    return %c0_i32, %c0_i32_0 : i32, i32
  }
  func.func @transform_3(%arg0: i32) -> (i32, i32) {
    %c0_i32 = arith.constant 0 : i32
    %c0_i32_0 = arith.constant 0 : i32
    %c0_i32_1 = arith.constant 0 : i32
    return %c0_i32, %c0_i32_0 : i32, i32
  }
  func.func @transform_4(%arg0: i32) -> (i32, i32) {
    %c0_i32 = arith.constant 0 : i32
    %c0_i32_0 = arith.constant 0 : i32
    %c0_i32_1 = arith.constant 0 : i32
    return %c0_i32, %c0_i32_0 : i32, i32
  }
  func.func @transform_5(%arg0: i32) -> (i32, i32) {
    %c0_i32 = arith.constant 0 : i32
    %c0_i32_0 = arith.constant 0 : i32
    %c0_i32_1 = arith.constant 0 : i32
    return %c0_i32, %c0_i32_0 : i32, i32
  }
  func.func @transform_6(%arg0: i32) -> (i32, i32) {
    %c0_i32 = arith.constant 0 : i32
    %c0_i32_0 = arith.constant 0 : i32
    %c0_i32_1 = arith.constant 0 : i32
    return %c0_i32, %c0_i32_0 : i32, i32
  }
  func.func @transform_7(%arg0: i32) -> (i32, i32) {
    %c0_i32 = arith.constant 0 : i32
    %c0_i32_0 = arith.constant 0 : i32
    return %arg0, %c0_i32 : i32, i32
  }
}

</mosaic_0001>

<llo_original>
// kernel: tpu_custom_call.1
$region0: #{tpu_custom_call.1}
  #allocation0 [shape = 'u32[]', space=smem, size = 0x4, offset = 0x4, fixed_abs, tag = 'smem constant byte address 0x4 - core index']
  #allocation1 [shape = 'u32[144,128]{1,0:T(1,128)}', space=vmem, size = 0x12000, scoped, tag = 'internal scratch']
  #allocation2 [shape = 'f32[1,1]{1,0:T(1,128)S(1)}', space=vmem, size = 0x200, scoped, tag = 'scoped memory for tpu_custom_call.1']
  %s0 = inlined_call_operand.hbm [shape: f32[8,1536], index: 0, kind: input, shape index: {}]
  %s1 = inlined_call_operand.hbm [shape: bf16[1536,512], index: 1, kind: input, shape index: {}]
  %s2 = inlined_call_operand.hbm [shape: f32[1,512], index: 2, kind: input, shape index: {}]
  %s3 = inlined_call_operand.hbm [shape: bf16[512,128], index: 3, kind: input, shape index: {}]
  %s4 = inlined_call_operand.hbm [shape: f32[1,128], index: 4, kind: input, shape index: {}]
  %s5 = inlined_call_operand.hbm [shape: f32[1,128], index: 5, kind: input, shape index: {}]
  %s6 = inlined_call_operand.<no memory space> [shape: f32[1,1], index: 6, kind: input, shape index: {}]
  %s7 = inlined_call_operand.vmem [shape: f32[8,1], index: 7, kind: output, shape index: {}]
  %s8 = sld [smem:[#allocation0]]
  $region62: #{tpu_custom_call.1} parent=0
    _
  %s10 = ssub.s32 1, %s8
  %s11 = scalar_select 0, %s10, %s8
  %v12 = vstv %s6
  %13 = vst [vmem:[#allocation2] sm:$0x1] %v12
  $region1: #{tpu_custom_call.1} parent=0
    #allocation3 [shape = 'u8[49152]{0}', space=vmem, size = 0xc000, scoped, tag = 'input window, operand 0, single buffered']
    #allocation4 [shape = 's32[1]{0}', space=sflag, size = 0x4, scoped, tag = 'scoped memory for tpu_custom_call.1']
    #allocation5 [shape = 'u8[1572864]{0}', space=vmem, size = 0x180000, scoped, tag = 'input window, operand 1, single buffered']
    #allocation6 [shape = 's32[1]{0}', space=sflag, size = 0x4, scoped, tag = 'scoped memory for tpu_custom_call.1']
    #allocation7 [shape = 'u8[2048]{0}', space=vmem, size = 0x800, scoped, tag = 'input window, operand 2, single buffered']
    #allocation8 [shape = 'u8[131072]{0}', space=vmem, size = 0x20000, scoped, tag = 'input window, operand 3, single buffered']
    #allocation9 [shape = 's32[1]{0}', space=sflag, size = 0x4, scoped, tag = 'scoped memory for tpu_custom_call.1']
    #allocation10 [shape = 'u8[512]{0}', space=vmem, size = 0x400, scoped, tag = 'input window, operand 4, single buffered']
    #allocation11 [shape = 'u8[512]{0}', space=vmem, size = 0x400, scoped, tag = 'input window, operand 5, single buffered']
    #allocation12 [shape = 's32[1]{0}', space=sflag, size = 0x4, scoped, tag = 'scoped memory for tpu_custom_call.1']
    %14 = vsyncpa [#allocation4], 0
    %15 = vsyncpa [#allocation6], 0
    %16 = vsyncpa [#allocation9], 0
    %17 = vsyncpa [#allocation12], 0
    // Predicated region
    $region2: #{tpu_custom_call.1} parent=1 // pred_check
      _
    $region3: #{tpu_custom_call.1} parent=1 // pred_check_branch
      %19 = sbr.rel (0) target = $region5
    $region4: #{tpu_custom_call.1} parent=1 // pred_region
      %s21 = ssub.s32 1536, 1536
      %22 = vsyncadd [#allocation4], %s21
      %s24 = sshll.u32 [#allocation3], 4
      %s25 = int_to_ptr.vmem [resolvable:$true] %s24
      %27 = dma.hbm_to_vmem [thread:$0]  %s0, 1536, %s25, [#allocation4]
    $region5: #{tpu_custom_call.1} parent=1 // pred_fallthru
      _
    // Predicated region
    $region6: #{tpu_custom_call.1} parent=1 // pred_check
      _
    $region7: #{tpu_custom_call.1} parent=1 // pred_check_branch
      %29 = sbr.rel (0) target = $region9
    $region8: #{tpu_custom_call.1} parent=1 // pred_region
      %s31 = ssub.s32 49152, 49152
      %32 = vsyncadd [#allocation6], %s31
      %s33 = sshll.u32 [#allocation5], 4
      %s34 = int_to_ptr.vmem [resolvable:$true] %s33
      %39 = dma.hbm_to_vmem [thread:$0]  %s1, 49152, %s34, [#allocation6], 256, 256, 16
    $region9: #{tpu_custom_call.1} parent=1 // pred_fallthru
      _
    // Predicated region
    $region10: #{tpu_custom_call.1} parent=1 // pred_check
      _
    $region11: #{tpu_custom_call.1} parent=1 // pred_check_branch
      %41 = sbr.rel (0) target = $region13
    $region12: #{tpu_custom_call.1} parent=1 // pred_region
      %s43 = ssub.s32 64, 64
      %44 = vsyncadd [#allocation6], %s43
      %s46 = sshll.u32 [#allocation7], 4
      %s47 = int_to_ptr.vmem [resolvable:$true] %s46
      %49 = dma.hbm_to_vmem [thread:$0]  %s2, 64, %s47, [#allocation6]
    $region13: #{tpu_custom_call.1} parent=1 // pred_fallthru
      _
    // Predicated region
    $region14: #{tpu_custom_call.1} parent=1 // pred_check
      _
    $region15: #{tpu_custom_call.1} parent=1 // pred_check_branch
      %51 = sbr.rel (0) target = $region17
    $region16: #{tpu_custom_call.1} parent=1 // pred_region
      %s53 = ssub.s32 4096, 4096
      %54 = vsyncadd [#allocation9], %s53
      %s55 = sshll.u32 [#allocation8], 4
      %s56 = int_to_ptr.vmem [resolvable:$true] %s55
      %61 = dma.hbm_to_vmem [thread:$0]  %s3, 4096, %s56, [#allocation9], 64, 64, 4
    $region17: #{tpu_custom_call.1} parent=1 // pred_fallthru
      _
    // Predicated region
    $region18: #{tpu_custom_call.1} parent=1 // pred_check
      _
    $region19: #{tpu_custom_call.1} parent=1 // pred_check_branch
      %63 = sbr.rel (0) target = $region21
    $region20: #{tpu_custom_call.1} parent=1 // pred_region
      %s65 = ssub.s32 16, 16
      %66 = vsyncadd [#allocation9], %s65
      %s68 = sshll.u32 [#allocation10], 4
      %s69 = int_to_ptr.vmem [resolvable:$true] %s68
      %71 = dma.hbm_to_vmem [thread:$0]  %s4, 16, %s69, [#allocation9]
    $region21: #{tpu_custom_call.1} parent=1 // pred_fallthru
      _
    // Predicated region
    $region22: #{tpu_custom_call.1} parent=1 // pred_check
      _
    $region23: #{tpu_custom_call.1} parent=1 // pred_check_branch
      %73 = sbr.rel (0) target = $region25
    $region24: #{tpu_custom_call.1} parent=1 // pred_region
      %s75 = ssub.s32 16, 16
      %76 = vsyncadd [#allocation12], %s75
      %s78 = sshll.u32 [#allocation11], 4
      %s79 = int_to_ptr.vmem [resolvable:$true] %s78
      %81 = dma.hbm_to_vmem [thread:$0]  %s5, 16, %s79, [#allocation12]
    $region25: #{tpu_custom_call.1} parent=1 // pred_fallthru
      _
    // Predicated region
    $region26: #{tpu_custom_call.1} parent=1 // pred_check
      _
    $region27: #{tpu_custom_call.1} parent=1 // pred_check_branch
      %83 = sbr.rel (0) target = $region29
    $region28: #{tpu_custom_call.1} parent=1 // pred_region
      _
    $region29: #{tpu_custom_call.1} parent=1 // pred_fallthru
      _
    // Predicated region
    $region30: #{tpu_custom_call.1} parent=1 // pred_check
      _
    $region31: #{tpu_custom_call.1} parent=1 // pred_check_branch
      %85 = sbr.rel (0) target = $region33
    $region32: #{tpu_custom_call.1} parent=1 // pred_region
      %86 = dma.done [#allocation4], 1536
    $region33: #{tpu_custom_call.1} parent=1 // pred_fallthru
      _
    // Predicated region
    $region34: #{tpu_custom_call.1} parent=1 // pred_check
      _
    $region35: #{tpu_custom_call.1} parent=1 // pred_check_branch
      %88 = sbr.rel (0) target = $region37
    $region36: #{tpu_custom_call.1} parent=1 // pred_region
      %89 = dma.done [#allocation6], 49152
    $region37: #{tpu_custom_call.1} parent=1 // pred_fallthru
      _
    // Predicated region
    $region38: #{tpu_custom_call.1} parent=1 // pred_check
      _
    $region39: #{tpu_custom_call.1} parent=1 // pred_check_branch
      %91 = sbr.rel (0) target = $region41
    $region40: #{tpu_custom_call.1} parent=1 // pred_region
      %92 = dma.done [#allocation6], 64
    $region41: #{tpu_custom_call.1} parent=1 // pred_fallthru
      _
    // Predicated region
    $region42: #{tpu_custom_call.1} parent=1 // pred_check
      _
    $region43: #{tpu_custom_call.1} parent=1 // pred_check_branch
      %94 = sbr.rel (0) target = $region45
    $region44: #{tpu_custom_call.1} parent=1 // pred_region
      %95 = dma.done [#allocation9], 4096
    $region45: #{tpu_custom_call.1} parent=1 // pred_fallthru
      _
    // Predicated region
    $region46: #{tpu_custom_call.1} parent=1 // pred_check
      _
    $region47: #{tpu_custom_call.1} parent=1 // pred_check_branch
      %97 = sbr.rel (0) target = $region49
    $region48: #{tpu_custom_call.1} parent=1 // pred_region
      %98 = dma.done [#allocation9], 16
    $region49: #{tpu_custom_call.1} parent=1 // pred_fallthru
      _
    // Predicated region
    $region50: #{tpu_custom_call.1} parent=1 // pred_check
      _
    $region51: #{tpu_custom_call.1} parent=1 // pred_check_branch
      %100 = sbr.rel (0) target = $region53
    $region52: #{tpu_custom_call.1} parent=1 // pred_region
      %101 = dma.done [#allocation12], 16
    $region53: #{tpu_custom_call.1} parent=1 // pred_fallthru
      _
    %v103 = vld [vmem:[#allocation3] sm:$0xff]
    %v104 = vld [vmem:[#allocation3 + $0x8] sm:$0xff]
    %v105 = vld [vmem:[#allocation3 + $0x10] sm:$0xff]
    %v106 = vld [vmem:[#allocation3 + $0x18] sm:$0xff]
    %v107 = vld [vmem:[#allocation3 + $0x20] sm:$0xff]
    %v108 = vld [vmem:[#allocation3 + $0x28] sm:$0xff]
    %v109 = vld [vmem:[#allocation3 + $0x30] sm:$0xff]
    %v110 = vld [vmem:[#allocation3 + $0x38] sm:$0xff]
    %v111 = vld [vmem:[#allocation3 + $0x40] sm:$0xff]
    %v112 = vld [vmem:[#allocation3 + $0x48] sm:$0xff]
    %v113 = vld [vmem:[#allocation3 + $0x50] sm:$0xff]
    %v114 = vld [vmem:[#allocation3 + $0x58] sm:$0xff]
    %v115 = vpack.c.bf16 %v103, %v103
    %v116 = vpack.c.bf16 %v104, %v104
    %v117 = vpack.c.bf16 %v105, %v105
    %v118 = vpack.c.bf16 %v106, %v106
    %v119 = vpack.c.bf16 %v107, %v107
    %v120 = vpack.c.bf16 %v108, %v108
    %v121 = vpack.c.bf16 %v109, %v109
    %v122 = vpack.c.bf16 %v110, %v110
    %v123 = vpack.c.bf16 %v111, %v111
    %v124 = vpack.c.bf16 %v112, %v112
    %v125 = vpack.c.bf16 %v113, %v113
    %v126 = vpack.c.bf16 %v114, %v114
    %v127 = vld [vmem:[#allocation5] sm:$0xff]
    %v128 = vld [vmem:[#allocation5 + $0x8] sm:$0xff]
    %v129 = vld [vmem:[#allocation5 + $0x10] sm:$0xff]
    %v130 = vld [vmem:[#allocation5 + $0x18] sm:$0xff]
    %v131 = vld [vmem:[#allocation5 + $0x20] sm:$0xff]
    %v132 = vld [vmem:[#allocation5 + $0x28] sm:$0xff]
    %v133 = vld [vmem:[#allocation5 + $0x30] sm:$0xff]
    %v134 = vld [vmem:[#allocation5 + $0x38] sm:$0xff]
    %v135 = vld [vmem:[#allocation5 + $0x40] sm:$0xff]
    %v136 = vld [vmem:[#allocation5 + $0x48] sm:$0xff]
    %v137 = vld [vmem:[#allocation5 + $0x50] sm:$0xff]
    %v138 = vld [vmem:[#allocation5 + $0x58] sm:$0xff]
    %v139 = vld [vmem:[#allocation5 + $0x60] sm:$0xff]
    %v140 = vld [vmem:[#allocation5 + $0x68] sm:$0xff]
    %v141 = vld [vmem:[#allocation5 + $0x70] sm:$0xff]
    %v142 = vld [vmem:[#allocation5 + $0x78] sm:$0xff]
    %v143 = vld [vmem:[#allocation5 + $0x80] sm:$0xff]
    %v144 = vld [vmem:[#allocation5 + $0x88] sm:$0xff]
    %v145 = vld [vmem:[#allocation5 + $0x90] sm:$0xff]
    %v146 = vld [vmem:[#allocation5 + $0x98] sm:$0xff]
    %v147 = vld [vmem:[#allocation5 + $0xa0] sm:$0xff]
    %v148 = vld [vmem:[#allocation5 + $0xa8] sm:$0xff]
    %v149 = vld [vmem:[#allocation5 + $0xb0] sm:$0xff]
    %v150 = vld [vmem:[#allocation5 + $0xb8] sm:$0xff]
    %v151 = vld [vmem:[#allocation5 + $0xc0] sm:$0xff]
    %v152 = vld [vmem:[#allocation5 + $0xc8] sm:$0xff]
    %v153 = vld [vmem:[#allocation5 + $0xd0] sm:$0xff]
    %v154 = vld [vmem:[#allocation5 + $0xd8] sm:$0xff]
    %v155 = vld [vmem:[#allocation5 + $0xe0] sm:$0xff]
    %v156 = vld [vmem:[#allocation5 + $0xe8] sm:$0xff]
    %v157 = vld [vmem:[#allocation5 + $0xf0] sm:$0xff]
    %v158 = vld [vmem:[#allocation5 + $0xf8] sm:$0xff]
    %v159 = vld [vmem:[#allocation5 + $0x100] sm:$0xff]
    %v160 = vld [vmem:[#allocation5 + $0x108] sm:$0xff]
    %v161 = vld [vmem:[#allocation5 + $0x110] sm:$0xff]
    %v162 = vld [vmem:[#allocation5 + $0x118] sm:$0xff]
    %v163 = vld [vmem:[#allocation5 + $0x120] sm:$0xff]
    %v164 = vld [vmem:[#allocation5 + $0x128] sm:$0xff]
    %v165 = vld [vmem:[#allocation5 + $0x130] sm:$0xff]
    %v166 = vld [vmem:[#allocation5 + $0x138] sm:$0xff]
    %v167 = vld [vmem:[#allocation5 + $0x140] sm:$0xff]
    %v168 = vld [vmem:[#allocation5 + $0x148] sm:$0xff]
    %v169 = vld [vmem:[#allocation5 + $0x150] sm:$0xff]
    %v170 = vld [vmem:[#allocation5 + $0x158] sm:$0xff]
    %v171 = vld [vmem:[#allocation5 + $0x160] sm:$0xff]
    %v172 = vld [vmem:[#allocation5 + $0x168] sm:$0xff]
    %v173 = vld [vmem:[#allocation5 + $0x170] sm:$0xff]
    %v174 = vld [vmem:[#allocation5 + $0x178] sm:$0xff]
    %v175 = vld [vmem:[#allocation5 + $0x180] sm:$0xff]
    %v176 = vld [vmem:[#allocation5 + $0x188] sm:$0xff]
    %v177 = vld [vmem:[#allocation5 + $0x190] sm:$0xff]
    %v178 = vld [vmem:[#allocation5 + $0x198] sm:$0xff]
    %v179 = vld [vmem:[#allocation5 + $0x1a0] sm:$0xff]
    %v180 = vld [vmem:[#allocation5 + $0x1a8] sm:$0xff]
    %v181 = vld [vmem:[#allocation5 + $0x1b0] sm:$0xff]
    %v182 = vld [vmem:[#allocation5 + $0x1b8] sm:$0xff]
    %v183 = vld [vmem:[#allocation5 + $0x1c0] sm:$0xff]
    %v184 = vld [vmem:[#allocation5 + $0x1c8] sm:$0xff]
    %v185 = vld [vmem:[#allocation5 + $0x1d0] sm:$0xff]
    %v186 = vld [vmem:[#allocation5 + $0x1d8] sm:$0xff]
    %v187 = vld [vmem:[#allocation5 + $0x1e0] sm:$0xff]
    %v188 = vld [vmem:[#allocation5 + $0x1e8] sm:$0xff]
    %v189 = vld [vmem:[#allocation5 + $0x1f0] sm:$0xff]
    %v190 = vld [vmem:[#allocation5 + $0x1f8] sm:$0xff]
    %v191 = vld [vmem:[#allocation5 + $0x200] sm:$0xff]
    %v192 = vld [vmem:[#allocation5 + $0x208] sm:$0xff]
    %v193 = vld [vmem:[#allocation5 + $0x210] sm:$0xff]
    %v194 = vld [vmem:[#allocation5 + $0x218] sm:$0xff]
    %v195 = vld [vmem:[#allocation5 + $0x220] sm:$0xff]
    %v196 = vld [vmem:[#allocation5 + $0x228] sm:$0xff]
    %v197 = vld [vmem:[#allocation5 + $0x230] sm:$0xff]
    %v198 = vld [vmem:[#allocation5 + $0x238] sm:$0xff]
    %v199 = vld [vmem:[#allocation5 + $0x240] sm:$0xff]
    %v200 = vld [vmem:[#allocation5 + $0x248] sm:$0xff]
    %v201 = vld [vmem:[#allocation5 + $0x250] sm:$0xff]
    %v202 = vld [vmem:[#allocation5 + $0x258] sm:$0xff]
    %v203 = vld [vmem:[#allocation5 + $0x260] sm:$0xff]
    %v204 = vld [vmem:[#allocation5 + $0x268] sm:$0xff]
    %v205 = vld [vmem:[#allocation5 + $0x270] sm:$0xff]
    %v206 = vld [vmem:[#allocation5 + $0x278] sm:$0xff]
    %v207 = vld [vmem:[#allocation5 + $0x280] sm:$0xff]
    %v208 = vld [vmem:[#allocation5 + $0x288] sm:$0xff]
    %v209 = vld [vmem:[#allocation5 + $0x290] sm:$0xff]
    %v210 = vld [vmem:[#allocation5 + $0x298] sm:$0xff]
    %v211 = vld [vmem:[#allocation5 + $0x2a0] sm:$0xff]
    %v212 = vld [vmem:[#allocation5 + $0x2a8] sm:$0xff]
    %v213 = vld [vmem:[#allocation5 + $0x2b0] sm:$0xff]
    %v214 = vld [vmem:[#allocation5 + $0x2b8] sm:$0xff]
    %v215 = vld [vmem:[#allocation5 + $0x2c0] sm:$0xff]
    %v216 = vld [vmem:[#allocation5 + $0x2c8] sm:$0xff]
    %v217 = vld [vmem:[#allocation5 + $0x2d0] sm:$0xff]
    %v218 = vld [vmem:[#allocation5 + $0x2d8] sm:$0xff]
    %v219 = vld [vmem:[#allocation5 + $0x2e0] sm:$0xff]
    %v220 = vld [vmem:[#allocation5 + $0x2e8] sm:$0xff]
    %v221 = vld [vmem:[#allocation5 + $0x2f0] sm:$0xff]
    %v222 = vld [vmem:[#allocation5 + $0x2f8] sm:$0xff]
    %v223 = vld [vmem:[#allocation5 + $0x300] sm:$0xff]
    %v224 = vld [vmem:[#allocation5 + $0x308] sm:$0xff]
    %v225 = vld [vmem:[#allocation5 + $0x310] sm:$0xff]
    %v226 = vld [vmem:[#allocation5 + $0x318] sm:$0xff]
    %v227 = vld [vmem:[#allocation5 + $0x320] sm:$0xff]
    %v228 = vld [vmem:[#allocation5 + $0x328] sm:$0xff]
    %v229 = vld [vmem:[#allocation5 + $0x330] sm:$0xff]
    %v230 = vld [vmem:[#allocation5 + $0x338] sm:$0xff]
    %v231 = vld [vmem:[#allocation5 + $0x340] sm:$0xff]
    %v232 = vld [vmem:[#allocation5 + $0x348] sm:$0xff]
    %v233 = vld [vmem:[#allocation5 + $0x350] sm:$0xff]
    %v234 = vld [vmem:[#allocation5 + $0x358] sm:$0xff]
    %v235 = vld [vmem:[#allocation5 + $0x360] sm:$0xff]
    %v236 = vld [vmem:[#allocation5 + $0x368] sm:$0xff]
    %v237 = vld [vmem:[#allocation5 + $0x370] sm:$0xff]
    %v238 = vld [vmem:[#allocation5 + $0x378] sm:$0xff]
    %v239 = vld [vmem:[#allocation5 + $0x380] sm:$0xff]
    %v240 = vld [vmem:[#allocation5 + $0x388] sm:$0xff]
    %v241 = vld [vmem:[#allocation5 + $0x390] sm:$0xff]
    %v242 = vld [vmem:[#allocation5 + $0x398] sm:$0xff]
    %v243 = vld [vmem:[#allocation5 + $0x3a0] sm:$0xff]
    %v244 = vld [vmem:[#allocation5 + $0x3a8] sm:$0xff]
    %v245 = vld [vmem:[#allocation5 + $0x3b0] sm:$0xff]
    %v246 = vld [vmem:[#allocation5 + $0x3b8] sm:$0xff]
    %v247 = vld [vmem:[#allocation5 + $0x3c0] sm:$0xff]
    %v248 = vld [vmem:[#allocation5 + $0x3c8] sm:$0xff]
    %v249 = vld [vmem:[#allocation5 + $0x3d0] sm:$0xff]
    %v250 = vld [vmem:[#allocation5 + $0x3d8] sm:$0xff]
    %v251 = vld [vmem:[#allocation5 + $0x3e0] sm:$0xff]
    %v252 = vld [vmem:[#allocation5 + $0x3e8] sm:$0xff]
    %v253 = vld [vmem:[#allocation5 + $0x3f0] sm:$0xff]
    %v254 = vld [vmem:[#allocation5 + $0x3f8] sm:$0xff]
    %v255 = vld [vmem:[#allocation5 + $0x400] sm:$0xff]
    %v256 = vld [vmem:[#allocation5 + $0x408] sm:$0xff]
    %v257 = vld [vmem:[#allocation5 + $0x410] sm:$0xff]
    %v258 = vld [vmem:[#allocation5 + $0x418] sm:$0xff]
    %v259 = vld [vmem:[#allocation5 + $0x420] sm:$0xff]
    %v260 = vld [vmem:[#allocation5 + $0x428] sm:$0xff]
    %v261 = vld [vmem:[#allocation5 + $0x430] sm:$0xff]
    %v262 = vld [vmem:[#allocation5 + $0x438] sm:$0xff]
    %v263 = vld [vmem:[#allocation5 + $0x440] sm:$0xff]
    %v264 = vld [vmem:[#allocation5 + $0x448] sm:$0xff]
    %v265 = vld [vmem:[#allocation5 + $0x450] sm:$0xff]
    %v266 = vld [vmem:[#allocation5 + $0x458] sm:$0xff]
    %v267 = vld [vmem:[#allocation5 + $0x460] sm:$0xff]
    %v268 = vld [vmem:[#allocation5 + $0x468] sm:$0xff]
    %v269 = vld [vmem:[#allocation5 + $0x470] sm:$0xff]
    %v270 = vld [vmem:[#allocation5 + $0x478] sm:$0xff]
    %v271 = vld [vmem:[#allocation5 + $0x480] sm:$0xff]
    %v272 = vld [vmem:[#allocation5 + $0x488] sm:$0xff]
    %v273 = vld [vmem:[#allocation5 + $0x490] sm:$0xff]
    %v274 = vld [vmem:[#allocation5 + $0x498] sm:$0xff]
    %v275 = vld [vmem:[#allocation5 + $0x4a0] sm:$0xff]
    %v276 = vld [vmem:[#allocation5 + $0x4a8] sm:$0xff]
    %v277 = vld [vmem:[#allocation5 + $0x4b0] sm:$0xff]
    %v278 = vld [vmem:[#allocation5 + $0x4b8] sm:$0xff]
    %v279 = vld [vmem:[#allocation5 + $0x4c0] sm:$0xff]
    %v280 = vld [vmem:[#allocation5 + $0x4c8] sm:$0xff]
    %v281 = vld [vmem:[#allocation5 + $0x4d0] sm:$0xff]
    %v282 = vld [vmem:[#allocation5 + $0x4d8] sm:$0xff]
    %v283 = vld [vmem:[#allocation5 + $0x4e0] sm:$0xff]
    %v284 = vld [vmem:[#allocation5 + $0x4e8] sm:$0xff]
    %v285 = vld [vmem:[#allocation5 + $0x4f0] sm:$0xff]
    %v286 = vld [vmem:[#allocation5 + $0x4f8] sm:$0xff]
    %v287 = vld [vmem:[#allocation5 + $0x500] sm:$0xff]
    %v288 = vld [vmem:[#allocation5 + $0x508] sm:$0xff]
    %v289 = vld [vmem:[#allocation5 + $0x510] sm:$0xff]
    %v290 = vld [vmem:[#allocation5 + $0x518] sm:$0xff]
    %v291 = vld [vmem:[#allocation5 + $0x520] sm:$0xff]
    %v292 = vld [vmem:[#allocation5 + $0x528] sm:$0xff]
    %v293 = vld [vmem:[#allocation5 + $0x530] sm:$0xff]
    %v294 = vld [vmem:[#allocation5 + $0x538] sm:$0xff]
    %v295 = vld [vmem:[#allocation5 + $0x540] sm:$0xff]
    %v296 = vld [vmem:[#allocation5 + $0x548] sm:$0xff]
    %v297 = vld [vmem:[#allocation5 + $0x550] sm:$0xff]
    %v298 = vld [vmem:[#allocation5 + $0x558] sm:$0xff]
    %v299 = vld [vmem:[#allocation5 + $0x560] sm:$0xff]
    %v300 = vld [vmem:[#allocation5 + $0x568] sm:$0xff]
    %v301 = vld [vmem:[#allocation5 + $0x570] sm:$0xff]
    %v302 = vld [vmem:[#allocation5 + $0x578] sm:$0xff]
    %v303 = vld [vmem:[#allocation5 + $0x580] sm:$0xff]
    %v304 = vld [vmem:[#allocation5 + $0x588] sm:$0xff]
    %v305 = vld [vmem:[#allocation5 + $0x590] sm:$0xff]
    %v306 = vld [vmem:[#allocation5 + $0x598] sm:$0xff]
    %v307 = vld [vmem:[#allocation5 + $0x5a0] sm:$0xff]
    %v308 = vld [vmem:[#allocation5 + $0x5a8] sm:$0xff]
    %v309 = vld [vmem:[#allocation5 + $0x5b0] sm:$0xff]
    %v310 = vld [vmem:[#allocation5 + $0x5b8] sm:$0xff]
    %v311 = vld [vmem:[#allocation5 + $0x5c0] sm:$0xff]
    %v312 = vld [vmem:[#allocation5 + $0x5c8] sm:$0xff]
    %v313 = vld [vmem:[#allocation5 + $0x5d0] sm:$0xff]
    %v314 = vld [vmem:[#allocation5 + $0x5d8] sm:$0xff]
    %v315 = vld [vmem:[#allocation5 + $0x5e0] sm:$0xff]
    %v316 = vld [vmem:[#allocation5 + $0x5e8] sm:$0xff]
    %v317 = vld [vmem:[#allocation5 + $0x5f0] sm:$0xff]
    %v318 = vld [vmem:[#allocation5 + $0x5f8] sm:$0xff]
    %v319 = vld [vmem:[#allocation5 + $0x600] sm:$0xff]
    %v320 = vld [vmem:[#allocation5 + $0x608] sm:$0xff]
    %v321 = vld [vmem:[#allocation5 + $0x610] sm:$0xff]
    %v322 = vld [vmem:[#allocation5 + $0x618] sm:$0xff]
    %v323 = vld [vmem:[#allocation5 + $0x620] sm:$0xff]
    %v324 = vld [vmem:[#allocation5 + $0x628] sm:$0xff]
    %v325 = vld [vmem:[#allocation5 + $0x630] sm:$0xff]
    %v326 = vld [vmem:[#allocation5 + $0x638] sm:$0xff]
    %v327 = vld [vmem:[#allocation5 + $0x640] sm:$0xff]
    %v328 = vld [vmem:[#allocation5 + $0x648] sm:$0xff]
    %v329 = vld [vmem:[#allocation5 + $0x650] sm:$0xff]
    %v330 = vld [vmem:[#allocation5 + $0x658] sm:$0xff]
    %v331 = vld [vmem:[#allocation5 + $0x660] sm:$0xff]
    %v332 = vld [vmem:[#allocation5 + $0x668] sm:$0xff]
    %v333 = vld [vmem:[#allocation5 + $0x670] sm:$0xff]
    %v334 = vld [vmem:[#allocation5 + $0x678] sm:$0xff]
    %v335 = vld [vmem:[#allocation5 + $0x680] sm:$0xff]
    %v336 = vld [vmem:[#allocation5 + $0x688] sm:$0xff]
    %v337 = vld [vmem:[#allocation5 + $0x690] sm:$0xff]
    %v338 = vld [vmem:[#allocation5 + $0x698] sm:$0xff]
    %v339 = vld [vmem:[#allocation5 + $0x6a0] sm:$0xff]
    %v340 = vld [vmem:[#allocation5 + $0x6a8] sm:$0xff]
    %v341 = vld [vmem:[#allocation5 + $0x6b0] sm:$0xff]
    %v342 = vld [vmem:[#allocation5 + $0x6b8] sm:$0xff]
    %v343 = vld [vmem:[#allocation5 + $0x6c0] sm:$0xff]
    %v344 = vld [vmem:[#allocation5 + $0x6c8] sm:$0xff]
    %v345 = vld [vmem:[#allocation5 + $0x6d0] sm:$0xff]
    %v346 = vld [vmem:[#allocation5 + $0x6d8] sm:$0xff]
    %v347 = vld [vmem:[#allocation5 + $0x6e0] sm:$0xff]
    %v348 = vld [vmem:[#allocation5 + $0x6e8] sm:$0xff]
    %v349 = vld [vmem:[#allocation5 + $0x6f0] sm:$0xff]
    %v350 = vld [vmem:[#allocation5 + $0x6f8] sm:$0xff]
    %v351 = vld [vmem:[#allocation5 + $0x700] sm:$0xff]
    %v352 = vld [vmem:[#allocation5 + $0x708] sm:$0xff]
    %v353 = vld [vmem:[#allocation5 + $0x710] sm:$0xff]
    %v354 = vld [vmem:[#allocation5 + $0x718] sm:$0xff]
    %v355 = vld [vmem:[#allocation5 + $0x720] sm:$0xff]
    %v356 = vld [vmem:[#allocation5 + $0x728] sm:$0xff]
    %v357 = vld [vmem:[#allocation5 + $0x730] sm:$0xff]
    %v358 = vld [vmem:[#allocation5 + $0x738] sm:$0xff]
    %v359 = vld [vmem:[#allocation5 + $0x740] sm:$0xff]
    %v360 = vld [vmem:[#allocation5 + $0x748] sm:$0xff]
    %v361 = vld [vmem:[#allocation5 + $0x750] sm:$0xff]
    %v362 = vld [vmem:[#allocation5 + $0x758] sm:$0xff]
    %v363 = vld [vmem:[#allocation5 + $0x760] sm:$0xff]
    %v364 = vld [vmem:[#allocation5 + $0x768] sm:$0xff]
    %v365 = vld [vmem:[#allocation5 + $0x770] sm:$0xff]
    %v366 = vld [vmem:[#allocation5 + $0x778] sm:$0xff]
    %v367 = vld [vmem:[#allocation5 + $0x780] sm:$0xff]
    %v368 = vld [vmem:[#allocation5 + $0x788] sm:$0xff]
    %v369 = vld [vmem:[#allocation5 + $0x790] sm:$0xff]
    %v370 = vld [vmem:[#allocation5 + $0x798] sm:$0xff]
    %v371 = vld [vmem:[#allocation5 + $0x7a0] sm:$0xff]
    %v372 = vld [vmem:[#allocation5 + $0x7a8] sm:$0xff]
    %v373 = vld [vmem:[#allocation5 + $0x7b0] sm:$0xff]
    %v374 = vld [vmem:[#allocation5 + $0x7b8] sm:$0xff]
    %v375 = vld [vmem:[#allocation5 + $0x7c0] sm:$0xff]
    %v376 = vld [vmem:[#allocation5 + $0x7c8] sm:$0xff]
    %v377 = vld [vmem:[#allocation5 + $0x7d0] sm:$0xff]
    %v378 = vld [vmem:[#allocation5 + $0x7d8] sm:$0xff]
    %v379 = vld [vmem:[#allocation5 + $0x7e0] sm:$0xff]
    %v380 = vld [vmem:[#allocation5 + $0x7e8] sm:$0xff]
    %v381 = vld [vmem:[#allocation5 + $0x7f0] sm:$0xff]
    %v382 = vld [vmem:[#allocation5 + $0x7f8] sm:$0xff]
    %v383 = vld [vmem:[#allocation5 + $0x800] sm:$0xff]
    %v384 = vld [vmem:[#allocation5 + $0x808] sm:$0xff]
    %v385 = vld [vmem:[#allocation5 + $0x810] sm:$0xff]
    %v386 = vld [vmem:[#allocation5 + $0x818] sm:$0xff]
    %v387 = vld [vmem:[#allocation5 + $0x820] sm:$0xff]
    %v388 = vld [vmem:[#allocation5 + $0x828] sm:$0xff]
    %v389 = vld [vmem:[#allocation5 + $0x830] sm:$0xff]
    %v390 = vld [vmem:[#allocation5 + $0x838] sm:$0xff]
    %v391 = vld [vmem:[#allocation5 + $0x840] sm:$0xff]
    %v392 = vld [vmem:[#allocation5 + $0x848] sm:$0xff]
    %v393 = vld [vmem:[#allocation5 + $0x850] sm:$0xff]
    %v394 = vld [vmem:[#allocation5 + $0x858] sm:$0xff]
    %v395 = vld [vmem:[#allocation5 + $0x860] sm:$0xff]
    %v396 = vld [vmem:[#allocation5 + $0x868] sm:$0xff]
    %v397 = vld [vmem:[#allocation5 + $0x870] sm:$0xff]
    %v398 = vld [vmem:[#allocation5 + $0x878] sm:$0xff]
    %v399 = vld [vmem:[#allocation5 + $0x880] sm:$0xff]
    %v400 = vld [vmem:[#allocation5 + $0x888] sm:$0xff]
    %v401 = vld [vmem:[#allocation5 + $0x890] sm:$0xff]
    %v402 = vld [vmem:[#allocation5 + $0x898] sm:$0xff]
    %v403 = vld [vmem:[#allocation5 + $0x8a0] sm:$0xff]
    %v404 = vld [vmem:[#allocation5 + $0x8a8] sm:$0xff]
    %v405 = vld [vmem:[#allocation5 + $0x8b0] sm:$0xff]
    %v406 = vld [vmem:[#allocation5 + $0x8b8] sm:$0xff]
    %v407 = vld [vmem:[#allocation5 + $0x8c0] sm:$0xff]
    %v408 = vld [vmem:[#allocation5 + $0x8c8] sm:$0xff]
    %v409 = vld [vmem:[#allocation5 + $0x8d0] sm:$0xff]
    %v410 = vld [vmem:[#allocation5 + $0x8d8] sm:$0xff]
    %v411 = vld [vmem:[#allocation5 + $0x8e0] sm:$0xff]
    %v412 = vld [vmem:[#allocation5 + $0x8e8] sm:$0xff]
    %v413 = vld [vmem:[#allocation5 + $0x8f0] sm:$0xff]
    %v414 = vld [vmem:[#allocation5 + $0x8f8] sm:$0xff]
    %v415 = vld [vmem:[#allocation5 + $0x900] sm:$0xff]
    %v416 = vld [vmem:[#allocation5 + $0x908] sm:$0xff]
    %v417 = vld [vmem:[#allocation5 + $0x910] sm:$0xff]
    %v418 = vld [vmem:[#allocation5 + $0x918] sm:$0xff]
    %v419 = vld [vmem:[#allocation5 + $0x920] sm:$0xff]
    %v420 = vld [vmem:[#allocation5 + $0x928] sm:$0xff]
    %v421 = vld [vmem:[#allocation5 + $0x930] sm:$0xff]
    %v422 = vld [vmem:[#allocation5 + $0x938] sm:$0xff]
    %v423 = vld [vmem:[#allocation5 + $0x940] sm:$0xff]
    %v424 = vld [vmem:[#allocation5 + $0x948] sm:$0xff]
    %v425 = vld [vmem:[#allocation5 + $0x950] sm:$0xff]
    %v426 = vld [vmem:[#allocation5 + $0x958] sm:$0xff]
    %v427 = vld [vmem:[#allocation5 + $0x960] sm:$0xff]
    %v428 = vld [vmem:[#allocation5 + $0x968] sm:$0xff]
    %v429 = vld [vmem:[#allocation5 + $0x970] sm:$0xff]
    %v430 = vld [vmem:[#allocation5 + $0x978] sm:$0xff]
    %v431 = vld [vmem:[#allocation5 + $0x980] sm:$0xff]
    %v432 = vld [vmem:[#allocation5 + $0x988] sm:$0xff]
    %v433 = vld [vmem:[#allocation5 + $0x990] sm:$0xff]
    %v434 = vld [vmem:[#allocation5 + $0x998] sm:$0xff]
    %v435 = vld [vmem:[#allocation5 + $0x9a0] sm:$0xff]
    %v436 = vld [vmem:[#allocation5 + $0x9a8] sm:$0xff]
    %v437 = vld [vmem:[#allocation5 + $0x9b0] sm:$0xff]
    %v438 = vld [vmem:[#allocation5 + $0x9b8] sm:$0xff]
    %v439 = vld [vmem:[#allocation5 + $0x9c0] sm:$0xff]
    %v440 = vld [vmem:[#allocation5 + $0x9c8] sm:$0xff]
    %v441 = vld [vmem:[#allocation5 + $0x9d0] sm:$0xff]
    %v442 = vld [vmem:[#allocation5 + $0x9d8] sm:$0xff]
    %v443 = vld [vmem:[#allocation5 + $0x9e0] sm:$0xff]
    %v444 = vld [vmem:[#allocation5 + $0x9e8] sm:$0xff]
    %v445 = vld [vmem:[#allocation5 + $0x9f0] sm:$0xff]
    %v446 = vld [vmem:[#allocation5 + $0x9f8] sm:$0xff]
    %v447 = vld [vmem:[#allocation5 + $0xa00] sm:$0xff]
    %v448 = vld [vmem:[#allocation5 + $0xa08] sm:$0xff]
    %v449 = vld [vmem:[#allocation5 + $0xa10] sm:$0xff]
    %v450 = vld [vmem:[#allocation5 + $0xa18] sm:$0xff]
    %v451 = vld [vmem:[#allocation5 + $0xa20] sm:$0xff]
    %v452 = vld [vmem:[#allocation5 + $0xa28] sm:$0xff]
    %v453 = vld [vmem:[#allocation5 + $0xa30] sm:$0xff]
    %v454 = vld [vmem:[#allocation5 + $0xa38] sm:$0xff]
    %v455 = vld [vmem:[#allocation5 + $0xa40] sm:$0xff]
    %v456 = vld [vmem:[#allocation5 + $0xa48] sm:$0xff]
    %v457 = vld [vmem:[#allocation5 + $0xa50] sm:$0xff]
    %v458 = vld [vmem:[#allocation5 + $0xa58] sm:$0xff]
    %v459 = vld [vmem:[#allocation5 + $0xa60] sm:$0xff]
    %v460 = vld [vmem:[#allocation5 + $0xa68] sm:$0xff]
    %v461 = vld [vmem:[#allocation5 + $0xa70] sm:$0xff]
    %v462 = vld [vmem:[#allocation5 + $0xa78] sm:$0xff]
    %v463 = vld [vmem:[#allocation5 + $0xa80] sm:$0xff]
    %v464 = vld [vmem:[#allocation5 + $0xa88] sm:$0xff]
    %v465 = vld [vmem:[#allocation5 + $0xa90] sm:$0xff]
    %v466 = vld [vmem:[#allocation5 + $0xa98] sm:$0xff]
    %v467 = vld [vmem:[#allocation5 + $0xaa0] sm:$0xff]
    %v468 = vld [vmem:[#allocation5 + $0xaa8] sm:$0xff]
    %v469 = vld [vmem:[#allocation5 + $0xab0] sm:$0xff]
    %v470 = vld [vmem:[#allocation5 + $0xab8] sm:$0xff]
    %v471 = vld [vmem:[#allocation5 + $0xac0] sm:$0xff]
    %v472 = vld [vmem:[#allocation5 + $0xac8] sm:$0xff]
    %v473 = vld [vmem:[#allocation5 + $0xad0] sm:$0xff]
    %v474 = vld [vmem:[#allocation5 + $0xad8] sm:$0xff]
    %v475 = vld [vmem:[#allocation5 + $0xae0] sm:$0xff]
    %v476 = vld [vmem:[#allocation5 + $0xae8] sm:$0xff]
    %v477 = vld [vmem:[#allocation5 + $0xaf0] sm:$0xff]
    %v478 = vld [vmem:[#allocation5 + $0xaf8] sm:$0xff]
    %v479 = vld [vmem:[#allocation5 + $0xb00] sm:$0xff]
    %v480 = vld [vmem:[#allocation5 + $0xb08] sm:$0xff]
    %v481 = vld [vmem:[#allocation5 + $0xb10] sm:$0xff]
    %v482 = vld [vmem:[#allocation5 + $0xb18] sm:$0xff]
    %v483 = vld [vmem:[#allocation5 + $0xb20] sm:$0xff]
    %v484 = vld [vmem:[#allocation5 + $0xb28] sm:$0xff]
    %v485 = vld [vmem:[#allocation5 + $0xb30] sm:$0xff]
    %v486 = vld [vmem:[#allocation5 + $0xb38] sm:$0xff]
    %v487 = vld [vmem:[#allocation5 + $0xb40] sm:$0xff]
    %v488 = vld [vmem:[#allocation5 + $0xb48] sm:$0xff]
    %v489 = vld [vmem:[#allocation5 + $0xb50] sm:$0xff]
    %v490 = vld [vmem:[#allocation5 + $0xb58] sm:$0xff]
    %v491 = vld [vmem:[#allocation5 + $0xb60] sm:$0xff]
    %v492 = vld [vmem:[#allocation5 + $0xb68] sm:$0xff]
    %v493 = vld [vmem:[#allocation5 + $0xb70] sm:$0xff]
    %v494 = vld [vmem:[#allocation5 + $0xb78] sm:$0xff]
    %v495 = vld [vmem:[#allocation5 + $0xb80] sm:$0xff]
    %v496 = vld [vmem:[#allocation5 + $0xb88] sm:$0xff]
    %v497 = vld [vmem:[#allocation5 + $0xb90] sm:$0xff]
    %v498 = vld [vmem:[#allocation5 + $0xb98] sm:$0xff]
    %v499 = vld [vmem:[#allocation5 + $0xba0] sm:$0xff]
    %v500 = vld [vmem:[#allocation5 + $0xba8] sm:$0xff]
    %v501 = vld [vmem:[#allocation5 + $0xbb0] sm:$0xff]
    %v502 = vld [vmem:[#allocation5 + $0xbb8] sm:$0xff]
    %v503 = vld [vmem:[#allocation5 + $0xbc0] sm:$0xff]
    %v504 = vld [vmem:[#allocation5 + $0xbc8] sm:$0xff]
    %v505 = vld [vmem:[#allocation5 + $0xbd0] sm:$0xff]
    %v506 = vld [vmem:[#allocation5 + $0xbd8] sm:$0xff]
    %v507 = vld [vmem:[#allocation5 + $0xbe0] sm:$0xff]
    %v508 = vld [vmem:[#allocation5 + $0xbe8] sm:$0xff]
    %v509 = vld [vmem:[#allocation5 + $0xbf0] sm:$0xff]
    %v510 = vld [vmem:[#allocation5 + $0xbf8] sm:$0xff]
    %v511 = vld [vmem:[#allocation7] sm:$0xf]
    %v513 = vlaneseq
    %v514 = vshrl.u32 %v513, 7
    %v515 = vsub.s32 0, %v514
    %v516 = vrot.slane %v511, %v515
    %v517 = vlaneseq
    %v518 = vshrl.u32 %v517, 7
    %v519 = vsub.s32 1, %v518
    %v520 = vrot.slane %v511, %v519
    %v521 = vlaneseq
    %v522 = vshrl.u32 %v521, 7
    %v523 = vsub.s32 2, %v522
    %v524 = vrot.slane %v511, %v523
    %v525 = vlaneseq
    %v526 = vshrl.u32 %v525, 7
    %v527 = vsub.s32 3, %v526
    %v528 = vrot.slane %v511, %v527
    %v917 = vunpack.c.l.b16 %v127
    %v918 = vunpack.c.h.b16 %v127
    %v919 = vunpack.c.l.b16 %v128
    %v920 = vunpack.c.h.b16 %v128
    %v921 = vunpack.c.l.b16 %v129
    %v922 = vunpack.c.h.b16 %v129
    %v923 = vunpack.c.l.b16 %v130
    %v924 = vunpack.c.h.b16 %v130
    %v925 = vunpack.c.l.b16 %v131
    %v926 = vunpack.c.h.b16 %v131
    %v927 = vunpack.c.l.b16 %v132
    %v928 = vunpack.c.h.b16 %v132
    %v929 = vunpack.c.l.b16 %v133
    %v930 = vunpack.c.h.b16 %v133
    %v931 = vunpack.c.l.b16 %v134
    %v932 = vunpack.c.h.b16 %v134
    %v933 = vunpack.c.l.b16 %v135
    %v934 = vunpack.c.h.b16 %v135
    %v935 = vunpack.c.l.b16 %v136
    %v936 = vunpack.c.h.b16 %v136
    %v937 = vunpack.c.l.b16 %v137
    %v938 = vunpack.c.h.b16 %v137
    %v939 = vunpack.c.l.b16 %v138
    %v940 = vunpack.c.h.b16 %v138
    %v941 = vunpack.c.l.b16 %v139
    %v942 = vunpack.c.h.b16 %v139
    %v943 = vunpack.c.l.b16 %v140
    %v944 = vunpack.c.h.b16 %v140
    %v945 = vunpack.c.l.b16 %v141
    %v946 = vunpack.c.h.b16 %v141
    %v947 = vunpack.c.l.b16 %v142
    %v948 = vunpack.c.h.b16 %v142
    %v949 = vunpack.c.l.b16 %v143
    %v950 = vunpack.c.h.b16 %v143
    %v951 = vunpack.c.l.b16 %v144
    %v952 = vunpack.c.h.b16 %v144
    %v953 = vunpack.c.l.b16 %v145
    %v954 = vunpack.c.h.b16 %v145
    %v955 = vunpack.c.l.b16 %v146
    %v956 = vunpack.c.h.b16 %v146
    %v957 = vunpack.c.l.b16 %v147
    %v958 = vunpack.c.h.b16 %v147
    %v959 = vunpack.c.l.b16 %v148
    %v960 = vunpack.c.h.b16 %v148
    %v961 = vunpack.c.l.b16 %v149
    %v962 = vunpack.c.h.b16 %v149
    %v963 = vunpack.c.l.b16 %v150
    %v964 = vunpack.c.h.b16 %v150
    %v965 = vunpack.c.l.b16 %v151
    %v966 = vunpack.c.h.b16 %v151
    %v967 = vunpack.c.l.b16 %v152
    %v968 = vunpack.c.h.b16 %v152
    %v969 = vunpack.c.l.b16 %v153
    %v970 = vunpack.c.h.b16 %v153
    %v971 = vunpack.c.l.b16 %v154
    %v972 = vunpack.c.h.b16 %v154
    %v973 = vunpack.c.l.b16 %v155
    %v974 = vunpack.c.h.b16 %v155
    %v975 = vunpack.c.l.b16 %v156
    %v976 = vunpack.c.h.b16 %v156
    %v977 = vunpack.c.l.b16 %v157
    %v978 = vunpack.c.h.b16 %v157
    %v979 = vunpack.c.l.b16 %v158
    %v980 = vunpack.c.h.b16 %v158
    %v981 = vunpack.c.l.b16 %v159
    %v982 = vunpack.c.h.b16 %v159
    %v983 = vunpack.c.l.b16 %v160
    %v984 = vunpack.c.h.b16 %v160
    %v985 = vunpack.c.l.b16 %v161
    %v986 = vunpack.c.h.b16 %v161
    %v987 = vunpack.c.l.b16 %v162
    %v988 = vunpack.c.h.b16 %v162
    %v989 = vunpack.c.l.b16 %v163
    %v990 = vunpack.c.h.b16 %v163
    %v991 = vunpack.c.l.b16 %v164
    %v992 = vunpack.c.h.b16 %v164
    %v993 = vunpack.c.l.b16 %v165
    %v994 = vunpack.c.h.b16 %v165
    %v995 = vunpack.c.l.b16 %v166
    %v996 = vunpack.c.h.b16 %v166
    %v997 = vunpack.c.l.b16 %v167
    %v998 = vunpack.c.h.b16 %v167
    %v999 = vunpack.c.l.b16 %v168
    %v1000 = vunpack.c.h.b16 %v168
    %v1001 = vunpack.c.l.b16 %v169
    %v1002 = vunpack.c.h.b16 %v169
    %v1003 = vunpack.c.l.b16 %v170
    %v1004 = vunpack.c.h.b16 %v170
    %v1005 = vunpack.c.l.b16 %v171
    %v1006 = vunpack.c.h.b16 %v171
    %v1007 = vunpack.c.l.b16 %v172
    %v1008 = vunpack.c.h.b16 %v172
    %v1009 = vunpack.c.l.b16 %v173
    %v1010 = vunpack.c.h.b16 %v173
    %v1011 = vunpack.c.l.b16 %v174
    %v1012 = vunpack.c.h.b16 %v174
    %v1013 = vunpack.c.l.b16 %v175
    %v1014 = vunpack.c.h.b16 %v175
    %v1015 = vunpack.c.l.b16 %v176
    %v1016 = vunpack.c.h.b16 %v176
    %v1017 = vunpack.c.l.b16 %v177
    %v1018 = vunpack.c.h.b16 %v177
    %v1019 = vunpack.c.l.b16 %v178
    %v1020 = vunpack.c.h.b16 %v178
    %v1021 = vunpack.c.l.b16 %v179
    %v1022 = vunpack.c.h.b16 %v179
    %v1023 = vunpack.c.l.b16 %v180
    %v1024 = vunpack.c.h.b16 %v180
    %v1025 = vunpack.c.l.b16 %v181
    %v1026 = vunpack.c.h.b16 %v181
    %v1027 = vunpack.c.l.b16 %v182
    %v1028 = vunpack.c.h.b16 %v182
    %v1029 = vunpack.c.l.b16 %v183
    %v1030 = vunpack.c.h.b16 %v183
    %v1031 = vunpack.c.l.b16 %v184
    %v1032 = vunpack.c.h.b16 %v184
    %v1033 = vunpack.c.l.b16 %v185
    %v1034 = vunpack.c.h.b16 %v185
    %v1035 = vunpack.c.l.b16 %v186
    %v1036 = vunpack.c.h.b16 %v186
    %v1037 = vunpack.c.l.b16 %v187
    %v1038 = vunpack.c.h.b16 %v187
    %v1039 = vunpack.c.l.b16 %v188
    %v1040 = vunpack.c.h.b16 %v188
    %v1041 = vunpack.c.l.b16 %v189
    %v1042 = vunpack.c.h.b16 %v189
    %v1043 = vunpack.c.l.b16 %v190
    %v1044 = vunpack.c.h.b16 %v190
    %v1045 = vunpack.c.l.b16 %v191
    %v1046 = vunpack.c.h.b16 %v191
    %v1047 = vunpack.c.l.b16 %v192
    %v1048 = vunpack.c.h.b16 %v192
    %v1049 = vunpack.c.l.b16 %v193
    %v1050 = vunpack.c.h.b16 %v193
    %v1051 = vunpack.c.l.b16 %v194
    %v1052 = vunpack.c.h.b16 %v194
    %v1053 = vunpack.c.l.b16 %v195
    %v1054 = vunpack.c.h.b16 %v195
    %v1055 = vunpack.c.l.b16 %v196
    %v1056 = vunpack.c.h.b16 %v196
    %v1057 = vunpack.c.l.b16 %v197
    %v1058 = vunpack.c.h.b16 %v197
    %v1059 = vunpack.c.l.b16 %v198
    %v1060 = vunpack.c.h.b16 %v198
    %v1061 = vunpack.c.l.b16 %v199
    %v1062 = vunpack.c.h.b16 %v199
    %v1063 = vunpack.c.l.b16 %v200
    %v1064 = vunpack.c.h.b16 %v200
    %v1065 = vunpack.c.l.b16 %v201
    %v1066 = vunpack.c.h.b16 %v201
    %v1067 = vunpack.c.l.b16 %v202
    %v1068 = vunpack.c.h.b16 %v202
    %v1069 = vunpack.c.l.b16 %v203
    %v1070 = vunpack.c.h.b16 %v203
    %v1071 = vunpack.c.l.b16 %v204
    %v1072 = vunpack.c.h.b16 %v204
    %v1073 = vunpack.c.l.b16 %v205
    %v1074 = vunpack.c.h.b16 %v205
    %v1075 = vunpack.c.l.b16 %v206
    %v1076 = vunpack.c.h.b16 %v206
    %v1077 = vunpack.c.l.b16 %v207
    %v1078 = vunpack.c.h.b16 %v207
    %v1079 = vunpack.c.l.b16 %v208
    %v1080 = vunpack.c.h.b16 %v208
    %v1081 = vunpack.c.l.b16 %v209
    %v1082 = vunpack.c.h.b16 %v209
    %v1083 = vunpack.c.l.b16 %v210
    %v1084 = vunpack.c.h.b16 %v210
    %v1085 = vunpack.c.l.b16 %v211
    %v1086 = vunpack.c.h.b16 %v211
    %v1087 = vunpack.c.l.b16 %v212
    %v1088 = vunpack.c.h.b16 %v212
    %v1089 = vunpack.c.l.b16 %v213
    %v1090 = vunpack.c.h.b16 %v213
    %v1091 = vunpack.c.l.b16 %v214
    %v1092 = vunpack.c.h.b16 %v214
    %v1093 = vunpack.c.l.b16 %v215
    %v1094 = vunpack.c.h.b16 %v215
    %v1095 = vunpack.c.l.b16 %v216
    %v1096 = vunpack.c.h.b16 %v216
    %v1097 = vunpack.c.l.b16 %v217
    %v1098 = vunpack.c.h.b16 %v217
    %v1099 = vunpack.c.l.b16 %v218
    %v1100 = vunpack.c.h.b16 %v218
    %v1101 = vunpack.c.l.b16 %v219
    %v1102 = vunpack.c.h.b16 %v219
    %v1103 = vunpack.c.l.b16 %v220
    %v1104 = vunpack.c.h.b16 %v220
    %v1105 = vunpack.c.l.b16 %v221
    %v1106 = vunpack.c.h.b16 %v221
    %v1107 = vunpack.c.l.b16 %v222
    %v1108 = vunpack.c.h.b16 %v222
    %v1109 = vunpack.c.l.b16 %v223
    %v1110 = vunpack.c.h.b16 %v223
    %v1111 = vunpack.c.l.b16 %v224
    %v1112 = vunpack.c.h.b16 %v224
    %v1113 = vunpack.c.l.b16 %v225
    %v1114 = vunpack.c.h.b16 %v225
    %v1115 = vunpack.c.l.b16 %v226
    %v1116 = vunpack.c.h.b16 %v226
    %v1117 = vunpack.c.l.b16 %v227
    %v1118 = vunpack.c.h.b16 %v227
    %v1119 = vunpack.c.l.b16 %v228
    %v1120 = vunpack.c.h.b16 %v228
    %v1121 = vunpack.c.l.b16 %v229
    %v1122 = vunpack.c.h.b16 %v229
    %v1123 = vunpack.c.l.b16 %v230
    %v1124 = vunpack.c.h.b16 %v230
    %v1125 = vunpack.c.l.b16 %v231
    %v1126 = vunpack.c.h.b16 %v231
    %v1127 = vunpack.c.l.b16 %v232
    %v1128 = vunpack.c.h.b16 %v232
    %v1129 = vunpack.c.l.b16 %v233
    %v1130 = vunpack.c.h.b16 %v233
    %v1131 = vunpack.c.l.b16 %v234
    %v1132 = vunpack.c.h.b16 %v234
    %v1133 = vunpack.c.l.b16 %v235
    %v1134 = vunpack.c.h.b16 %v235
    %v1135 = vunpack.c.l.b16 %v236
    %v1136 = vunpack.c.h.b16 %v236
    %v1137 = vunpack.c.l.b16 %v237
    %v1138 = vunpack.c.h.b16 %v237
    %v1139 = vunpack.c.l.b16 %v238
    %v1140 = vunpack.c.h.b16 %v238
    %v1141 = vunpack.c.l.b16 %v239
    %v1142 = vunpack.c.h.b16 %v239
    %v1143 = vunpack.c.l.b16 %v240
    %v1144 = vunpack.c.h.b16 %v240
    %v1145 = vunpack.c.l.b16 %v241
    %v1146 = vunpack.c.h.b16 %v241
    %v1147 = vunpack.c.l.b16 %v242
    %v1148 = vunpack.c.h.b16 %v242
    %v1149 = vunpack.c.l.b16 %v243
    %v1150 = vunpack.c.h.b16 %v243
    %v1151 = vunpack.c.l.b16 %v244
    %v1152 = vunpack.c.h.b16 %v244
    %v1153 = vunpack.c.l.b16 %v245
    %v1154 = vunpack.c.h.b16 %v245
    %v1155 = vunpack.c.l.b16 %v246
    %v1156 = vunpack.c.h.b16 %v246
    %v1157 = vunpack.c.l.b16 %v247
    %v1158 = vunpack.c.h.b16 %v247
    %v1159 = vunpack.c.l.b16 %v248
    %v1160 = vunpack.c.h.b16 %v248
    %v1161 = vunpack.c.l.b16 %v249
    %v1162 = vunpack.c.h.b16 %v249
    %v1163 = vunpack.c.l.b16 %v250
    %v1164 = vunpack.c.h.b16 %v250
    %v1165 = vunpack.c.l.b16 %v251
    %v1166 = vunpack.c.h.b16 %v251
    %v1167 = vunpack.c.l.b16 %v252
    %v1168 = vunpack.c.h.b16 %v252
    %v1169 = vunpack.c.l.b16 %v253
    %v1170 = vunpack.c.h.b16 %v253
    %v1171 = vunpack.c.l.b16 %v254
    %v1172 = vunpack.c.h.b16 %v254
    %v1173 = vunpack.c.l.b16 %v255
    %v1174 = vunpack.c.h.b16 %v255
    %v1175 = vunpack.c.l.b16 %v256
    %v1176 = vunpack.c.h.b16 %v256
    %v1177 = vunpack.c.l.b16 %v257
    %v1178 = vunpack.c.h.b16 %v257
    %v1179 = vunpack.c.l.b16 %v258
    %v1180 = vunpack.c.h.b16 %v258
    %v1181 = vunpack.c.l.b16 %v259
    %v1182 = vunpack.c.h.b16 %v259
    %v1183 = vunpack.c.l.b16 %v260
    %v1184 = vunpack.c.h.b16 %v260
    %v1185 = vunpack.c.l.b16 %v261
    %v1186 = vunpack.c.h.b16 %v261
    %v1187 = vunpack.c.l.b16 %v262
    %v1188 = vunpack.c.h.b16 %v262
    %v1189 = vunpack.c.l.b16 %v263
    %v1190 = vunpack.c.h.b16 %v263
    %v1191 = vunpack.c.l.b16 %v264
    %v1192 = vunpack.c.h.b16 %v264
    %v1193 = vunpack.c.l.b16 %v265
    %v1194 = vunpack.c.h.b16 %v265
    %v1195 = vunpack.c.l.b16 %v266
    %v1196 = vunpack.c.h.b16 %v266
    %v1197 = vunpack.c.l.b16 %v267
    %v1198 = vunpack.c.h.b16 %v267
    %v1199 = vunpack.c.l.b16 %v268
    %v1200 = vunpack.c.h.b16 %v268
    %v1201 = vunpack.c.l.b16 %v269
    %v1202 = vunpack.c.h.b16 %v269
    %v1203 = vunpack.c.l.b16 %v270
    %v1204 = vunpack.c.h.b16 %v270
    %v1205 = vunpack.c.l.b16 %v271
    %v1206 = vunpack.c.h.b16 %v271
    %v1207 = vunpack.c.l.b16 %v272
    %v1208 = vunpack.c.h.b16 %v272
    %v1209 = vunpack.c.l.b16 %v273
    %v1210 = vunpack.c.h.b16 %v273
    %v1211 = vunpack.c.l.b16 %v274
    %v1212 = vunpack.c.h.b16 %v274
    %v1213 = vunpack.c.l.b16 %v275
    %v1214 = vunpack.c.h.b16 %v275
    %v1215 = vunpack.c.l.b16 %v276
    %v1216 = vunpack.c.h.b16 %v276
    %v1217 = vunpack.c.l.b16 %v277
    %v1218 = vunpack.c.h.b16 %v277
    %v1219 = vunpack.c.l.b16 %v278
    %v1220 = vunpack.c.h.b16 %v278
    %v1221 = vunpack.c.l.b16 %v279
    %v1222 = vunpack.c.h.b16 %v279
    %v1223 = vunpack.c.l.b16 %v280
    %v1224 = vunpack.c.h.b16 %v280
    %v1225 = vunpack.c.l.b16 %v281
    %v1226 = vunpack.c.h.b16 %v281
    %v1227 = vunpack.c.l.b16 %v282
    %v1228 = vunpack.c.h.b16 %v282
    %v1229 = vunpack.c.l.b16 %v283
    %v1230 = vunpack.c.h.b16 %v283
    %v1231 = vunpack.c.l.b16 %v284
    %v1232 = vunpack.c.h.b16 %v284
    %v1233 = vunpack.c.l.b16 %v285
    %v1234 = vunpack.c.h.b16 %v285
    %v1235 = vunpack.c.l.b16 %v286
    %v1236 = vunpack.c.h.b16 %v286
    %v1237 = vunpack.c.l.b16 %v287
    %v1238 = vunpack.c.h.b16 %v287
    %v1239 = vunpack.c.l.b16 %v288
    %v1240 = vunpack.c.h.b16 %v288
    %v1241 = vunpack.c.l.b16 %v289
    %v1242 = vunpack.c.h.b16 %v289
    %v1243 = vunpack.c.l.b16 %v290
    %v1244 = vunpack.c.h.b16 %v290
    %v1245 = vunpack.c.l.b16 %v291
    %v1246 = vunpack.c.h.b16 %v291
    %v1247 = vunpack.c.l.b16 %v292
    %v1248 = vunpack.c.h.b16 %v292
    %v1249 = vunpack.c.l.b16 %v293
    %v1250 = vunpack.c.h.b16 %v293
    %v1251 = vunpack.c.l.b16 %v294
    %v1252 = vunpack.c.h.b16 %v294
    %v1253 = vunpack.c.l.b16 %v295
    %v1254 = vunpack.c.h.b16 %v295
    %v1255 = vunpack.c.l.b16 %v296
    %v1256 = vunpack.c.h.b16 %v296
    %v1257 = vunpack.c.l.b16 %v297
    %v1258 = vunpack.c.h.b16 %v297
    %v1259 = vunpack.c.l.b16 %v298
    %v1260 = vunpack.c.h.b16 %v298
    %v1261 = vunpack.c.l.b16 %v299
    %v1262 = vunpack.c.h.b16 %v299
    %v1263 = vunpack.c.l.b16 %v300
    %v1264 = vunpack.c.h.b16 %v300
    %v1265 = vunpack.c.l.b16 %v301
    %v1266 = vunpack.c.h.b16 %v301
    %v1267 = vunpack.c.l.b16 %v302
    %v1268 = vunpack.c.h.b16 %v302
    %v1269 = vunpack.c.l.b16 %v303
    %v1270 = vunpack.c.h.b16 %v303
    %v1271 = vunpack.c.l.b16 %v304
    %v1272 = vunpack.c.h.b16 %v304
    %v1273 = vunpack.c.l.b16 %v305
    %v1274 = vunpack.c.h.b16 %v305
    %v1275 = vunpack.c.l.b16 %v306
    %v1276 = vunpack.c.h.b16 %v306
    %v1277 = vunpack.c.l.b16 %v307
    %v1278 = vunpack.c.h.b16 %v307
    %v1279 = vunpack.c.l.b16 %v308
    %v1280 = vunpack.c.h.b16 %v308
    %v1281 = vunpack.c.l.b16 %v309
    %v1282 = vunpack.c.h.b16 %v309
    %v1283 = vunpack.c.l.b16 %v310
    %v1284 = vunpack.c.h.b16 %v310
    %v1285 = vunpack.c.l.b16 %v311
    %v1286 = vunpack.c.h.b16 %v311
    %v1287 = vunpack.c.l.b16 %v312
    %v1288 = vunpack.c.h.b16 %v312
    %v1289 = vunpack.c.l.b16 %v313
    %v1290 = vunpack.c.h.b16 %v313
    %v1291 = vunpack.c.l.b16 %v314
    %v1292 = vunpack.c.h.b16 %v314
    %v1293 = vunpack.c.l.b16 %v315
    %v1294 = vunpack.c.h.b16 %v315
    %v1295 = vunpack.c.l.b16 %v316
    %v1296 = vunpack.c.h.b16 %v316
    %v1297 = vunpack.c.l.b16 %v317
    %v1298 = vunpack.c.h.b16 %v317
    %v1299 = vunpack.c.l.b16 %v318
    %v1300 = vunpack.c.h.b16 %v318
    %v1301 = vunpack.c.l.b16 %v319
    %v1302 = vunpack.c.h.b16 %v319
    %v1303 = vunpack.c.l.b16 %v320
    %v1304 = vunpack.c.h.b16 %v320
    %v1305 = vunpack.c.l.b16 %v321
    %v1306 = vunpack.c.h.b16 %v321
    %v1307 = vunpack.c.l.b16 %v322
    %v1308 = vunpack.c.h.b16 %v322
    %v1309 = vunpack.c.l.b16 %v323
    %v1310 = vunpack.c.h.b16 %v323
    %v1311 = vunpack.c.l.b16 %v324
    %v1312 = vunpack.c.h.b16 %v324
    %v1313 = vunpack.c.l.b16 %v325
    %v1314 = vunpack.c.h.b16 %v325
    %v1315 = vunpack.c.l.b16 %v326
    %v1316 = vunpack.c.h.b16 %v326
    %v1317 = vunpack.c.l.b16 %v327
    %v1318 = vunpack.c.h.b16 %v327
    %v1319 = vunpack.c.l.b16 %v328
    %v1320 = vunpack.c.h.b16 %v328
    %v1321 = vunpack.c.l.b16 %v329
    %v1322 = vunpack.c.h.b16 %v329
    %v1323 = vunpack.c.l.b16 %v330
    %v1324 = vunpack.c.h.b16 %v330
    %v1325 = vunpack.c.l.b16 %v331
    %v1326 = vunpack.c.h.b16 %v331
    %v1327 = vunpack.c.l.b16 %v332
    %v1328 = vunpack.c.h.b16 %v332
    %v1329 = vunpack.c.l.b16 %v333
    %v1330 = vunpack.c.h.b16 %v333
    %v1331 = vunpack.c.l.b16 %v334
    %v1332 = vunpack.c.h.b16 %v334
    %v1333 = vunpack.c.l.b16 %v335
    %v1334 = vunpack.c.h.b16 %v335
    %v1335 = vunpack.c.l.b16 %v336
    %v1336 = vunpack.c.h.b16 %v336
    %v1337 = vunpack.c.l.b16 %v337
    %v1338 = vunpack.c.h.b16 %v337
    %v1339 = vunpack.c.l.b16 %v338
    %v1340 = vunpack.c.h.b16 %v338
    %v1341 = vunpack.c.l.b16 %v339
    %v1342 = vunpack.c.h.b16 %v339
    %v1343 = vunpack.c.l.b16 %v340
    %v1344 = vunpack.c.h.b16 %v340
    %v1345 = vunpack.c.l.b16 %v341
    %v1346 = vunpack.c.h.b16 %v341
    %v1347 = vunpack.c.l.b16 %v342
    %v1348 = vunpack.c.h.b16 %v342
    %v1349 = vunpack.c.l.b16 %v343
    %v1350 = vunpack.c.h.b16 %v343
    %v1351 = vunpack.c.l.b16 %v344
    %v1352 = vunpack.c.h.b16 %v344
    %v1353 = vunpack.c.l.b16 %v345
    %v1354 = vunpack.c.h.b16 %v345
    %v1355 = vunpack.c.l.b16 %v346
    %v1356 = vunpack.c.h.b16 %v346
    %v1357 = vunpack.c.l.b16 %v347
    %v1358 = vunpack.c.h.b16 %v347
    %v1359 = vunpack.c.l.b16 %v348
    %v1360 = vunpack.c.h.b16 %v348
    %v1361 = vunpack.c.l.b16 %v349
    %v1362 = vunpack.c.h.b16 %v349
    %v1363 = vunpack.c.l.b16 %v350
    %v1364 = vunpack.c.h.b16 %v350
    %v1365 = vunpack.c.l.b16 %v351
    %v1366 = vunpack.c.h.b16 %v351
    %v1367 = vunpack.c.l.b16 %v352
    %v1368 = vunpack.c.h.b16 %v352
    %v1369 = vunpack.c.l.b16 %v353
    %v1370 = vunpack.c.h.b16 %v353
    %v1371 = vunpack.c.l.b16 %v354
    %v1372 = vunpack.c.h.b16 %v354
    %v1373 = vunpack.c.l.b16 %v355
    %v1374 = vunpack.c.h.b16 %v355
    %v1375 = vunpack.c.l.b16 %v356
    %v1376 = vunpack.c.h.b16 %v356
    %v1377 = vunpack.c.l.b16 %v357
    %v1378 = vunpack.c.h.b16 %v357
    %v1379 = vunpack.c.l.b16 %v358
    %v1380 = vunpack.c.h.b16 %v358
    %v1381 = vunpack.c.l.b16 %v359
    %v1382 = vunpack.c.h.b16 %v359
    %v1383 = vunpack.c.l.b16 %v360
    %v1384 = vunpack.c.h.b16 %v360
    %v1385 = vunpack.c.l.b16 %v361
    %v1386 = vunpack.c.h.b16 %v361
    %v1387 = vunpack.c.l.b16 %v362
    %v1388 = vunpack.c.h.b16 %v362
    %v1389 = vunpack.c.l.b16 %v363
    %v1390 = vunpack.c.h.b16 %v363
    %v1391 = vunpack.c.l.b16 %v364
    %v1392 = vunpack.c.h.b16 %v364
    %v1393 = vunpack.c.l.b16 %v365
    %v1394 = vunpack.c.h.b16 %v365
    %v1395 = vunpack.c.l.b16 %v366
    %v1396 = vunpack.c.h.b16 %v366
    %v1397 = vunpack.c.l.b16 %v367
    %v1398 = vunpack.c.h.b16 %v367
    %v1399 = vunpack.c.l.b16 %v368
    %v1400 = vunpack.c.h.b16 %v368
    %v1401 = vunpack.c.l.b16 %v369
    %v1402 = vunpack.c.h.b16 %v369
    %v1403 = vunpack.c.l.b16 %v370
    %v1404 = vunpack.c.h.b16 %v370
    %v1405 = vunpack.c.l.b16 %v371
    %v1406 = vunpack.c.h.b16 %v371
    %v1407 = vunpack.c.l.b16 %v372
    %v1408 = vunpack.c.h.b16 %v372
    %v1409 = vunpack.c.l.b16 %v373
    %v1410 = vunpack.c.h.b16 %v373
    %v1411 = vunpack.c.l.b16 %v374
    %v1412 = vunpack.c.h.b16 %v374
    %v1413 = vunpack.c.l.b16 %v375
    %v1414 = vunpack.c.h.b16 %v375
    %v1415 = vunpack.c.l.b16 %v376
    %v1416 = vunpack.c.h.b16 %v376
    %v1417 = vunpack.c.l.b16 %v377
    %v1418 = vunpack.c.h.b16 %v377
    %v1419 = vunpack.c.l.b16 %v378
    %v1420 = vunpack.c.h.b16 %v378
    %v1421 = vunpack.c.l.b16 %v379
    %v1422 = vunpack.c.h.b16 %v379
    %v1423 = vunpack.c.l.b16 %v380
    %v1424 = vunpack.c.h.b16 %v380
    %v1425 = vunpack.c.l.b16 %v381
    %v1426 = vunpack.c.h.b16 %v381
    %v1427 = vunpack.c.l.b16 %v382
    %v1428 = vunpack.c.h.b16 %v382
    %v1429 = vunpack.c.l.b16 %v383
    %v1430 = vunpack.c.h.b16 %v383
    %v1431 = vunpack.c.l.b16 %v384
    %v1432 = vunpack.c.h.b16 %v384
    %v1433 = vunpack.c.l.b16 %v385
    %v1434 = vunpack.c.h.b16 %v385
    %v1435 = vunpack.c.l.b16 %v386
    %v1436 = vunpack.c.h.b16 %v386
    %v1437 = vunpack.c.l.b16 %v387
    %v1438 = vunpack.c.h.b16 %v387
    %v1439 = vunpack.c.l.b16 %v388
    %v1440 = vunpack.c.h.b16 %v388
    %v1441 = vunpack.c.l.b16 %v389
    %v1442 = vunpack.c.h.b16 %v389
    %v1443 = vunpack.c.l.b16 %v390
    %v1444 = vunpack.c.h.b16 %v390
    %v1445 = vunpack.c.l.b16 %v391
    %v1446 = vunpack.c.h.b16 %v391
    %v1447 = vunpack.c.l.b16 %v392
    %v1448 = vunpack.c.h.b16 %v392
    %v1449 = vunpack.c.l.b16 %v393
    %v1450 = vunpack.c.h.b16 %v393
    %v1451 = vunpack.c.l.b16 %v394
    %v1452 = vunpack.c.h.b16 %v394
    %v1453 = vunpack.c.l.b16 %v395
    %v1454 = vunpack.c.h.b16 %v395
    %v1455 = vunpack.c.l.b16 %v396
    %v1456 = vunpack.c.h.b16 %v396
    %v1457 = vunpack.c.l.b16 %v397
    %v1458 = vunpack.c.h.b16 %v397
    %v1459 = vunpack.c.l.b16 %v398
    %v1460 = vunpack.c.h.b16 %v398
    %v1461 = vunpack.c.l.b16 %v399
    %v1462 = vunpack.c.h.b16 %v399
    %v1463 = vunpack.c.l.b16 %v400
    %v1464 = vunpack.c.h.b16 %v400
    %v1465 = vunpack.c.l.b16 %v401
    %v1466 = vunpack.c.h.b16 %v401
    %v1467 = vunpack.c.l.b16 %v402
    %v1468 = vunpack.c.h.b16 %v402
    %v1469 = vunpack.c.l.b16 %v403
    %v1470 = vunpack.c.h.b16 %v403
    %v1471 = vunpack.c.l.b16 %v404
    %v1472 = vunpack.c.h.b16 %v404
    %v1473 = vunpack.c.l.b16 %v405
    %v1474 = vunpack.c.h.b16 %v405
    %v1475 = vunpack.c.l.b16 %v406
    %v1476 = vunpack.c.h.b16 %v406
    %v1477 = vunpack.c.l.b16 %v407
    %v1478 = vunpack.c.h.b16 %v407
    %v1479 = vunpack.c.l.b16 %v408
    %v1480 = vunpack.c.h.b16 %v408
    %v1481 = vunpack.c.l.b16 %v409
    %v1482 = vunpack.c.h.b16 %v409
    %v1483 = vunpack.c.l.b16 %v410
    %v1484 = vunpack.c.h.b16 %v410
    %v1485 = vunpack.c.l.b16 %v411
    %v1486 = vunpack.c.h.b16 %v411
    %v1487 = vunpack.c.l.b16 %v412
    %v1488 = vunpack.c.h.b16 %v412
    %v1489 = vunpack.c.l.b16 %v413
    %v1490 = vunpack.c.h.b16 %v413
    %v1491 = vunpack.c.l.b16 %v414
    %v1492 = vunpack.c.h.b16 %v414
    %v1493 = vunpack.c.l.b16 %v415
    %v1494 = vunpack.c.h.b16 %v415
    %v1495 = vunpack.c.l.b16 %v416
    %v1496 = vunpack.c.h.b16 %v416
    %v1497 = vunpack.c.l.b16 %v417
    %v1498 = vunpack.c.h.b16 %v417
    %v1499 = vunpack.c.l.b16 %v418
    %v1500 = vunpack.c.h.b16 %v418
    %v1501 = vunpack.c.l.b16 %v419
    %v1502 = vunpack.c.h.b16 %v419
    %v1503 = vunpack.c.l.b16 %v420
    %v1504 = vunpack.c.h.b16 %v420
    %v1505 = vunpack.c.l.b16 %v421
    %v1506 = vunpack.c.h.b16 %v421
    %v1507 = vunpack.c.l.b16 %v422
    %v1508 = vunpack.c.h.b16 %v422
    %v1509 = vunpack.c.l.b16 %v423
    %v1510 = vunpack.c.h.b16 %v423
    %v1511 = vunpack.c.l.b16 %v424
    %v1512 = vunpack.c.h.b16 %v424
    %v1513 = vunpack.c.l.b16 %v425
    %v1514 = vunpack.c.h.b16 %v425
    %v1515 = vunpack.c.l.b16 %v426
    %v1516 = vunpack.c.h.b16 %v426
    %v1517 = vunpack.c.l.b16 %v427
    %v1518 = vunpack.c.h.b16 %v427
    %v1519 = vunpack.c.l.b16 %v428
    %v1520 = vunpack.c.h.b16 %v428
    %v1521 = vunpack.c.l.b16 %v429
    %v1522 = vunpack.c.h.b16 %v429
    %v1523 = vunpack.c.l.b16 %v430
    %v1524 = vunpack.c.h.b16 %v430
    %v1525 = vunpack.c.l.b16 %v431
    %v1526 = vunpack.c.h.b16 %v431
    %v1527 = vunpack.c.l.b16 %v432
    %v1528 = vunpack.c.h.b16 %v432
    %v1529 = vunpack.c.l.b16 %v433
    %v1530 = vunpack.c.h.b16 %v433
    %v1531 = vunpack.c.l.b16 %v434
    %v1532 = vunpack.c.h.b16 %v434
    %v1533 = vunpack.c.l.b16 %v435
    %v1534 = vunpack.c.h.b16 %v435
    %v1535 = vunpack.c.l.b16 %v436
    %v1536 = vunpack.c.h.b16 %v436
    %v1537 = vunpack.c.l.b16 %v437
    %v1538 = vunpack.c.h.b16 %v437
    %v1539 = vunpack.c.l.b16 %v438
    %v1540 = vunpack.c.h.b16 %v438
    %v1541 = vunpack.c.l.b16 %v439
    %v1542 = vunpack.c.h.b16 %v439
    %v1543 = vunpack.c.l.b16 %v440
    %v1544 = vunpack.c.h.b16 %v440
    %v1545 = vunpack.c.l.b16 %v441
    %v1546 = vunpack.c.h.b16 %v441
    %v1547 = vunpack.c.l.b16 %v442
    %v1548 = vunpack.c.h.b16 %v442
    %v1549 = vunpack.c.l.b16 %v443
    %v1550 = vunpack.c.h.b16 %v443
    %v1551 = vunpack.c.l.b16 %v444
    %v1552 = vunpack.c.h.b16 %v444
    %v1553 = vunpack.c.l.b16 %v445
    %v1554 = vunpack.c.h.b16 %v445
    %v1555 = vunpack.c.l.b16 %v446
    %v1556 = vunpack.c.h.b16 %v446
    %v1557 = vunpack.c.l.b16 %v447
    %v1558 = vunpack.c.h.b16 %v447
    %v1559 = vunpack.c.l.b16 %v448
    %v1560 = vunpack.c.h.b16 %v448
    %v1561 = vunpack.c.l.b16 %v449
    %v1562 = vunpack.c.h.b16 %v449
    %v1563 = vunpack.c.l.b16 %v450
    %v1564 = vunpack.c.h.b16 %v450
    %v1565 = vunpack.c.l.b16 %v451
    %v1566 = vunpack.c.h.b16 %v451
    %v1567 = vunpack.c.l.b16 %v452
    %v1568 = vunpack.c.h.b16 %v452
    %v1569 = vunpack.c.l.b16 %v453
    %v1570 = vunpack.c.h.b16 %v453
    %v1571 = vunpack.c.l.b16 %v454
    %v1572 = vunpack.c.h.b16 %v454
    %v1573 = vunpack.c.l.b16 %v455
    %v1574 = vunpack.c.h.b16 %v455
    %v1575 = vunpack.c.l.b16 %v456
    %v1576 = vunpack.c.h.b16 %v456
    %v1577 = vunpack.c.l.b16 %v457
    %v1578 = vunpack.c.h.b16 %v457
    %v1579 = vunpack.c.l.b16 %v458
    %v1580 = vunpack.c.h.b16 %v458
    %v1581 = vunpack.c.l.b16 %v459
    %v1582 = vunpack.c.h.b16 %v459
    %v1583 = vunpack.c.l.b16 %v460
    %v1584 = vunpack.c.h.b16 %v460
    %v1585 = vunpack.c.l.b16 %v461
    %v1586 = vunpack.c.h.b16 %v461
    %v1587 = vunpack.c.l.b16 %v462
    %v1588 = vunpack.c.h.b16 %v462
    %v1589 = vunpack.c.l.b16 %v463
    %v1590 = vunpack.c.h.b16 %v463
    %v1591 = vunpack.c.l.b16 %v464
    %v1592 = vunpack.c.h.b16 %v464
    %v1593 = vunpack.c.l.b16 %v465
    %v1594 = vunpack.c.h.b16 %v465
    %v1595 = vunpack.c.l.b16 %v466
    %v1596 = vunpack.c.h.b16 %v466
    %v1597 = vunpack.c.l.b16 %v467
    %v1598 = vunpack.c.h.b16 %v467
    %v1599 = vunpack.c.l.b16 %v468
    %v1600 = vunpack.c.h.b16 %v468
    %v1601 = vunpack.c.l.b16 %v469
    %v1602 = vunpack.c.h.b16 %v469
    %v1603 = vunpack.c.l.b16 %v470
    %v1604 = vunpack.c.h.b16 %v470
    %v1605 = vunpack.c.l.b16 %v471
    %v1606 = vunpack.c.h.b16 %v471
    %v1607 = vunpack.c.l.b16 %v472
    %v1608 = vunpack.c.h.b16 %v472
    %v1609 = vunpack.c.l.b16 %v473
    %v1610 = vunpack.c.h.b16 %v473
    %v1611 = vunpack.c.l.b16 %v474
    %v1612 = vunpack.c.h.b16 %v474
    %v1613 = vunpack.c.l.b16 %v475
    %v1614 = vunpack.c.h.b16 %v475
    %v1615 = vunpack.c.l.b16 %v476
    %v1616 = vunpack.c.h.b16 %v476
    %v1617 = vunpack.c.l.b16 %v477
    %v1618 = vunpack.c.h.b16 %v477
    %v1619 = vunpack.c.l.b16 %v478
    %v1620 = vunpack.c.h.b16 %v478
    %v1621 = vunpack.c.l.b16 %v479
    %v1622 = vunpack.c.h.b16 %v479
    %v1623 = vunpack.c.l.b16 %v480
    %v1624 = vunpack.c.h.b16 %v480
    %v1625 = vunpack.c.l.b16 %v481
    %v1626 = vunpack.c.h.b16 %v481
    %v1627 = vunpack.c.l.b16 %v482
    %v1628 = vunpack.c.h.b16 %v482
    %v1629 = vunpack.c.l.b16 %v483
    %v1630 = vunpack.c.h.b16 %v483
    %v1631 = vunpack.c.l.b16 %v484
    %v1632 = vunpack.c.h.b16 %v484
    %v1633 = vunpack.c.l.b16 %v485
    %v1634 = vunpack.c.h.b16 %v485
    %v1635 = vunpack.c.l.b16 %v486
    %v1636 = vunpack.c.h.b16 %v486
    %v1637 = vunpack.c.l.b16 %v487
    %v1638 = vunpack.c.h.b16 %v487
    %v1639 = vunpack.c.l.b16 %v488
    %v1640 = vunpack.c.h.b16 %v488
    %v1641 = vunpack.c.l.b16 %v489
    %v1642 = vunpack.c.h.b16 %v489
    %v1643 = vunpack.c.l.b16 %v490
    %v1644 = vunpack.c.h.b16 %v490
    %v1645 = vunpack.c.l.b16 %v491
    %v1646 = vunpack.c.h.b16 %v491
    %v1647 = vunpack.c.l.b16 %v492
    %v1648 = vunpack.c.h.b16 %v492
    %v1649 = vunpack.c.l.b16 %v493
    %v1650 = vunpack.c.h.b16 %v493
    %v1651 = vunpack.c.l.b16 %v494
    %v1652 = vunpack.c.h.b16 %v494
    %v1653 = vunpack.c.l.b16 %v495
    %v1654 = vunpack.c.h.b16 %v495
    %v1655 = vunpack.c.l.b16 %v496
    %v1656 = vunpack.c.h.b16 %v496
    %v1657 = vunpack.c.l.b16 %v497
    %v1658 = vunpack.c.h.b16 %v497
    %v1659 = vunpack.c.l.b16 %v498
    %v1660 = vunpack.c.h.b16 %v498
    %v1661 = vunpack.c.l.b16 %v499
    %v1662 = vunpack.c.h.b16 %v499
    %v1663 = vunpack.c.l.b16 %v500
    %v1664 = vunpack.c.h.b16 %v500
    %v1665 = vunpack.c.l.b16 %v501
    %v1666 = vunpack.c.h.b16 %v501
    %v1667 = vunpack.c.l.b16 %v502
    %v1668 = vunpack.c.h.b16 %v502
    %v1669 = vunpack.c.l.b16 %v503
    %v1670 = vunpack.c.h.b16 %v503
    %v1671 = vunpack.c.l.b16 %v504
    %v1672 = vunpack.c.h.b16 %v504
    %v1673 = vunpack.c.l.b16 %v505
    %v1674 = vunpack.c.h.b16 %v505
    %v1675 = vunpack.c.l.b16 %v506
    %v1676 = vunpack.c.h.b16 %v506
    %v1677 = vunpack.c.l.b16 %v507
    %v1678 = vunpack.c.h.b16 %v507
    %v1679 = vunpack.c.l.b16 %v508
    %v1680 = vunpack.c.h.b16 %v508
    %v1681 = vunpack.c.l.b16 %v509
    %v1682 = vunpack.c.h.b16 %v509
    %v1683 = vunpack.c.l.b16 %v510
    %v1684 = vunpack.c.h.b16 %v510
    %v1685 = vpack.c.b16 %v921, %v917
    %v1686 = vpack.c.b16 %v922, %v918
    %v1687 = vpack.c.b16 %v923, %v919
    %v1688 = vpack.c.b16 %v924, %v920
    %v1689 = vpack.c.b16 %v929, %v925
    %v1690 = vpack.c.b16 %v930, %v926
    %v1691 = vpack.c.b16 %v931, %v927
    %v1692 = vpack.c.b16 %v932, %v928
    %v1693 = vpack.c.b16 %v937, %v933
    %v1694 = vpack.c.b16 %v938, %v934
    %v1695 = vpack.c.b16 %v939, %v935
    %v1696 = vpack.c.b16 %v940, %v936
    %v1697 = vpack.c.b16 %v945, %v941
    %v1698 = vpack.c.b16 %v946, %v942
    %v1699 = vpack.c.b16 %v947, %v943
    %v1700 = vpack.c.b16 %v948, %v944
    %v1701 = vpack.c.b16 %v953, %v949
    %v1702 = vpack.c.b16 %v954, %v950
    %v1703 = vpack.c.b16 %v955, %v951
    %v1704 = vpack.c.b16 %v956, %v952
    %v1705 = vpack.c.b16 %v961, %v957
    %v1706 = vpack.c.b16 %v962, %v958
    %v1707 = vpack.c.b16 %v963, %v959
    %v1708 = vpack.c.b16 %v964, %v960
    %v1709 = vpack.c.b16 %v969, %v965
    %v1710 = vpack.c.b16 %v970, %v966
    %v1711 = vpack.c.b16 %v971, %v967
    %v1712 = vpack.c.b16 %v972, %v968
    %v1713 = vpack.c.b16 %v977, %v973
    %v1714 = vpack.c.b16 %v978, %v974
    %v1715 = vpack.c.b16 %v979, %v975
    %v1716 = vpack.c.b16 %v980, %v976
    %v1717 = vpack.c.b16 %v985, %v981
    %v1718 = vpack.c.b16 %v986, %v982
    %v1719 = vpack.c.b16 %v987, %v983
    %v1720 = vpack.c.b16 %v988, %v984
    %v1721 = vpack.c.b16 %v993, %v989
    %v1722 = vpack.c.b16 %v994, %v990
    %v1723 = vpack.c.b16 %v995, %v991
    %v1724 = vpack.c.b16 %v996, %v992
    %v1725 = vpack.c.b16 %v1001, %v997
    %v1726 = vpack.c.b16 %v1002, %v998
    %v1727 = vpack.c.b16 %v1003, %v999
    %v1728 = vpack.c.b16 %v1004, %v1000
    %v1729 = vpack.c.b16 %v1009, %v1005
    %v1730 = vpack.c.b16 %v1010, %v1006
    %v1731 = vpack.c.b16 %v1011, %v1007
    %v1732 = vpack.c.b16 %v1012, %v1008
    %v1733 = vpack.c.b16 %v1017, %v1013
    %v1734 = vpack.c.b16 %v1018, %v1014
    %v1735 = vpack.c.b16 %v1019, %v1015
    %v1736 = vpack.c.b16 %v1020, %v1016
    %v1737 = vpack.c.b16 %v1025, %v1021
    %v1738 = vpack.c.b16 %v1026, %v1022
    %v1739 = vpack.c.b16 %v1027, %v1023
    %v1740 = vpack.c.b16 %v1028, %v1024
    %v1741 = vpack.c.b16 %v1033, %v1029
    %v1742 = vpack.c.b16 %v1034, %v1030
    %v1743 = vpack.c.b16 %v1035, %v1031
    %v1744 = vpack.c.b16 %v1036, %v1032
    %v1745 = vpack.c.b16 %v1041, %v1037
    %v1746 = vpack.c.b16 %v1042, %v1038
    %v1747 = vpack.c.b16 %v1043, %v1039
    %v1748 = vpack.c.b16 %v1044, %v1040
    %v1749 = vpack.c.b16 %v1049, %v1045
    %v1750 = vpack.c.b16 %v1050, %v1046
    %v1751 = vpack.c.b16 %v1051, %v1047
    %v1752 = vpack.c.b16 %v1052, %v1048
    %v1753 = vpack.c.b16 %v1057, %v1053
    %v1754 = vpack.c.b16 %v1058, %v1054
    %v1755 = vpack.c.b16 %v1059, %v1055
    %v1756 = vpack.c.b16 %v1060, %v1056
    %v1757 = vpack.c.b16 %v1065, %v1061
    %v1758 = vpack.c.b16 %v1066, %v1062
    %v1759 = vpack.c.b16 %v1067, %v1063
    %v1760 = vpack.c.b16 %v1068, %v1064
    %v1761 = vpack.c.b16 %v1073, %v1069
    %v1762 = vpack.c.b16 %v1074, %v1070
    %v1763 = vpack.c.b16 %v1075, %v1071
    %v1764 = vpack.c.b16 %v1076, %v1072
    %v1765 = vpack.c.b16 %v1081, %v1077
    %v1766 = vpack.c.b16 %v1082, %v1078
    %v1767 = vpack.c.b16 %v1083, %v1079
    %v1768 = vpack.c.b16 %v1084, %v1080
    %v1769 = vpack.c.b16 %v1089, %v1085
    %v1770 = vpack.c.b16 %v1090, %v1086
    %v1771 = vpack.c.b16 %v1091, %v1087
    %v1772 = vpack.c.b16 %v1092, %v1088
    %v1773 = vpack.c.b16 %v1097, %v1093
    %v1774 = vpack.c.b16 %v1098, %v1094
    %v1775 = vpack.c.b16 %v1099, %v1095
    %v1776 = vpack.c.b16 %v1100, %v1096
    %v1777 = vpack.c.b16 %v1105, %v1101
    %v1778 = vpack.c.b16 %v1106, %v1102
    %v1779 = vpack.c.b16 %v1107, %v1103
    %v1780 = vpack.c.b16 %v1108, %v1104
    %v1781 = vpack.c.b16 %v1113, %v1109
    %v1782 = vpack.c.b16 %v1114, %v1110
    %v1783 = vpack.c.b16 %v1115, %v1111
    %v1784 = vpack.c.b16 %v1116, %v1112
    %v1785 = vpack.c.b16 %v1121, %v1117
    %v1786 = vpack.c.b16 %v1122, %v1118
    %v1787 = vpack.c.b16 %v1123, %v1119
    %v1788 = vpack.c.b16 %v1124, %v1120
    %v1789 = vpack.c.b16 %v1129, %v1125
    %v1790 = vpack.c.b16 %v1130, %v1126
    %v1791 = vpack.c.b16 %v1131, %v1127
    %v1792 = vpack.c.b16 %v1132, %v1128
    %v1793 = vpack.c.b16 %v1137, %v1133
    %v1794 = vpack.c.b16 %v1138, %v1134
    %v1795 = vpack.c.b16 %v1139, %v1135
    %v1796 = vpack.c.b16 %v1140, %v1136
    %v1797 = vpack.c.b16 %v1145, %v1141
    %v1798 = vpack.c.b16 %v1146, %v1142
    %v1799 = vpack.c.b16 %v1147, %v1143
    %v1800 = vpack.c.b16 %v1148, %v1144
    %v1801 = vpack.c.b16 %v1153, %v1149
    %v1802 = vpack.c.b16 %v1154, %v1150
    %v1803 = vpack.c.b16 %v1155, %v1151
    %v1804 = vpack.c.b16 %v1156, %v1152
    %v1805 = vpack.c.b16 %v1161, %v1157
    %v1806 = vpack.c.b16 %v1162, %v1158
    %v1807 = vpack.c.b16 %v1163, %v1159
    %v1808 = vpack.c.b16 %v1164, %v1160
    %v1809 = vpack.c.b16 %v1169, %v1165
    %v1810 = vpack.c.b16 %v1170, %v1166
    %v1811 = vpack.c.b16 %v1171, %v1167
    %v1812 = vpack.c.b16 %v1172, %v1168
    %v1813 = vpack.c.b16 %v1177, %v1173
    %v1814 = vpack.c.b16 %v1178, %v1174
    %v1815 = vpack.c.b16 %v1179, %v1175
    %v1816 = vpack.c.b16 %v1180, %v1176
    %v1817 = vpack.c.b16 %v1185, %v1181
    %v1818 = vpack.c.b16 %v1186, %v1182
    %v1819 = vpack.c.b16 %v1187, %v1183
    %v1820 = vpack.c.b16 %v1188, %v1184
    %v1821 = vpack.c.b16 %v1193, %v1189
    %v1822 = vpack.c.b16 %v1194, %v1190
    %v1823 = vpack.c.b16 %v1195, %v1191
    %v1824 = vpack.c.b16 %v1196, %v1192
    %v1825 = vpack.c.b16 %v1201, %v1197
    %v1826 = vpack.c.b16 %v1202, %v1198
    %v1827 = vpack.c.b16 %v1203, %v1199
    %v1828 = vpack.c.b16 %v1204, %v1200
    %v1829 = vpack.c.b16 %v1209, %v1205
    %v1830 = vpack.c.b16 %v1210, %v1206
    %v1831 = vpack.c.b16 %v1211, %v1207
    %v1832 = vpack.c.b16 %v1212, %v1208
    %v1833 = vpack.c.b16 %v1217, %v1213
    %v1834 = vpack.c.b16 %v1218, %v1214
    %v1835 = vpack.c.b16 %v1219, %v1215
    %v1836 = vpack.c.b16 %v1220, %v1216
    %v1837 = vpack.c.b16 %v1225, %v1221
    %v1838 = vpack.c.b16 %v1226, %v1222
    %v1839 = vpack.c.b16 %v1227, %v1223
    %v1840 = vpack.c.b16 %v1228, %v1224
    %v1841 = vpack.c.b16 %v1233, %v1229
    %v1842 = vpack.c.b16 %v1234, %v1230
    %v1843 = vpack.c.b16 %v1235, %v1231
    %v1844 = vpack.c.b16 %v1236, %v1232
    %v1845 = vpack.c.b16 %v1241, %v1237
    %v1846 = vpack.c.b16 %v1242, %v1238
    %v1847 = vpack.c.b16 %v1243, %v1239
    %v1848 = vpack.c.b16 %v1244, %v1240
    %v1849 = vpack.c.b16 %v1249, %v1245
    %v1850 = vpack.c.b16 %v1250, %v1246
    %v1851 = vpack.c.b16 %v1251, %v1247
    %v1852 = vpack.c.b16 %v1252, %v1248
    %v1853 = vpack.c.b16 %v1257, %v1253
    %v1854 = vpack.c.b16 %v1258, %v1254
    %v1855 = vpack.c.b16 %v1259, %v1255
    %v1856 = vpack.c.b16 %v1260, %v1256
    %v1857 = vpack.c.b16 %v1265, %v1261
    %v1858 = vpack.c.b16 %v1266, %v1262
    %v1859 = vpack.c.b16 %v1267, %v1263
    %v1860 = vpack.c.b16 %v1268, %v1264
    %v1861 = vpack.c.b16 %v1273, %v1269
    %v1862 = vpack.c.b16 %v1274, %v1270
    %v1863 = vpack.c.b16 %v1275, %v1271
    %v1864 = vpack.c.b16 %v1276, %v1272
    %v1865 = vpack.c.b16 %v1281, %v1277
    %v1866 = vpack.c.b16 %v1282, %v1278
    %v1867 = vpack.c.b16 %v1283, %v1279
    %v1868 = vpack.c.b16 %v1284, %v1280
    %v1869 = vpack.c.b16 %v1289, %v1285
    %v1870 = vpack.c.b16 %v1290, %v1286
    %v1871 = vpack.c.b16 %v1291, %v1287
    %v1872 = vpack.c.b16 %v1292, %v1288
    %v1873 = vpack.c.b16 %v1297, %v1293
    %v1874 = vpack.c.b16 %v1298, %v1294
    %v1875 = vpack.c.b16 %v1299, %v1295
    %v1876 = vpack.c.b16 %v1300, %v1296
    %v1877 = vpack.c.b16 %v1305, %v1301
    %v1878 = vpack.c.b16 %v1306, %v1302
    %v1879 = vpack.c.b16 %v1307, %v1303
    %v1880 = vpack.c.b16 %v1308, %v1304
    %v1881 = vpack.c.b16 %v1313, %v1309
    %v1882 = vpack.c.b16 %v1314, %v1310
    %v1883 = vpack.c.b16 %v1315, %v1311
    %v1884 = vpack.c.b16 %v1316, %v1312
    %v1885 = vpack.c.b16 %v1321, %v1317
    %v1886 = vpack.c.b16 %v1322, %v1318
    %v1887 = vpack.c.b16 %v1323, %v1319
    %v1888 = vpack.c.b16 %v1324, %v1320
    %v1889 = vpack.c.b16 %v1329, %v1325
    %v1890 = vpack.c.b16 %v1330, %v1326
    %v1891 = vpack.c.b16 %v1331, %v1327
    %v1892 = vpack.c.b16 %v1332, %v1328
    %v1893 = vpack.c.b16 %v1337, %v1333
    %v1894 = vpack.c.b16 %v1338, %v1334
    %v1895 = vpack.c.b16 %v1339, %v1335
    %v1896 = vpack.c.b16 %v1340, %v1336
    %v1897 = vpack.c.b16 %v1345, %v1341
    %v1898 = vpack.c.b16 %v1346, %v1342
    %v1899 = vpack.c.b16 %v1347, %v1343
    %v1900 = vpack.c.b16 %v1348, %v1344
    %v1901 = vpack.c.b16 %v1353, %v1349
    %v1902 = vpack.c.b16 %v1354, %v1350
    %v1903 = vpack.c.b16 %v1355, %v1351
    %v1904 = vpack.c.b16 %v1356, %v1352
    %v1905 = vpack.c.b16 %v1361, %v1357
    %v1906 = vpack.c.b16 %v1362, %v1358
    %v1907 = vpack.c.b16 %v1363, %v1359
    %v1908 = vpack.c.b16 %v1364, %v1360
    %v1909 = vpack.c.b16 %v1369, %v1365
    %v1910 = vpack.c.b16 %v1370, %v1366
    %v1911 = vpack.c.b16 %v1371, %v1367
    %v1912 = vpack.c.b16 %v1372, %v1368
    %v1913 = vpack.c.b16 %v1377, %v1373
    %v1914 = vpack.c.b16 %v1378, %v1374
    %v1915 = vpack.c.b16 %v1379, %v1375
    %v1916 = vpack.c.b16 %v1380, %v1376
    %v1917 = vpack.c.b16 %v1385, %v1381
    %v1918 = vpack.c.b16 %v1386, %v1382
    %v1919 = vpack.c.b16 %v1387, %v1383
    %v1920 = vpack.c.b16 %v1388, %v1384
    %v1921 = vpack.c.b16 %v1393, %v1389
    %v1922 = vpack.c.b16 %v1394, %v1390
    %v1923 = vpack.c.b16 %v1395, %v1391
    %v1924 = vpack.c.b16 %v1396, %v1392
    %v1925 = vpack.c.b16 %v1401, %v1397
    %v1926 = vpack.c.b16 %v1402, %v1398
    %v1927 = vpack.c.b16 %v1403, %v1399
    %v1928 = vpack.c.b16 %v1404, %v1400
    %v1929 = vpack.c.b16 %v1409, %v1405
    %v1930 = vpack.c.b16 %v1410, %v1406
    %v1931 = vpack.c.b16 %v1411, %v1407
    %v1932 = vpack.c.b16 %v1412, %v1408
    %v1933 = vpack.c.b16 %v1417, %v1413
    %v1934 = vpack.c.b16 %v1418, %v1414
    %v1935 = vpack.c.b16 %v1419, %v1415
    %v1936 = vpack.c.b16 %v1420, %v1416
    %v1937 = vpack.c.b16 %v1425, %v1421
    %v1938 = vpack.c.b16 %v1426, %v1422
    %v1939 = vpack.c.b16 %v1427, %v1423
    %v1940 = vpack.c.b16 %v1428, %v1424
    %v1941 = vpack.c.b16 %v1433, %v1429
    %v1942 = vpack.c.b16 %v1434, %v1430
    %v1943 = vpack.c.b16 %v1435, %v1431
    %v1944 = vpack.c.b16 %v1436, %v1432
    %v1945 = vpack.c.b16 %v1441, %v1437
    %v1946 = vpack.c.b16 %v1442, %v1438
    %v1947 = vpack.c.b16 %v1443, %v1439
    %v1948 = vpack.c.b16 %v1444, %v1440
    %v1949 = vpack.c.b16 %v1449, %v1445
    %v1950 = vpack.c.b16 %v1450, %v1446
    %v1951 = vpack.c.b16 %v1451, %v1447
    %v1952 = vpack.c.b16 %v1452, %v1448
    %v1953 = vpack.c.b16 %v1457, %v1453
    %v1954 = vpack.c.b16 %v1458, %v1454
    %v1955 = vpack.c.b16 %v1459, %v1455
    %v1956 = vpack.c.b16 %v1460, %v1456
    %v1957 = vpack.c.b16 %v1465, %v1461
    %v1958 = vpack.c.b16 %v1466, %v1462
    %v1959 = vpack.c.b16 %v1467, %v1463
    %v1960 = vpack.c.b16 %v1468, %v1464
    %v1961 = vpack.c.b16 %v1473, %v1469
    %v1962 = vpack.c.b16 %v1474, %v1470
    %v1963 = vpack.c.b16 %v1475, %v1471
    %v1964 = vpack.c.b16 %v1476, %v1472
    %v1965 = vpack.c.b16 %v1481, %v1477
    %v1966 = vpack.c.b16 %v1482, %v1478
    %v1967 = vpack.c.b16 %v1483, %v1479
    %v1968 = vpack.c.b16 %v1484, %v1480
    %v1969 = vpack.c.b16 %v1489, %v1485
    %v1970 = vpack.c.b16 %v1490, %v1486
    %v1971 = vpack.c.b16 %v1491, %v1487
    %v1972 = vpack.c.b16 %v1492, %v1488
    %v1973 = vpack.c.b16 %v1497, %v1493
    %v1974 = vpack.c.b16 %v1498, %v1494
    %v1975 = vpack.c.b16 %v1499, %v1495
    %v1976 = vpack.c.b16 %v1500, %v1496
    %v1977 = vpack.c.b16 %v1505, %v1501
    %v1978 = vpack.c.b16 %v1506, %v1502
    %v1979 = vpack.c.b16 %v1507, %v1503
    %v1980 = vpack.c.b16 %v1508, %v1504
    %v1981 = vpack.c.b16 %v1513, %v1509
    %v1982 = vpack.c.b16 %v1514, %v1510
    %v1983 = vpack.c.b16 %v1515, %v1511
    %v1984 = vpack.c.b16 %v1516, %v1512
    %v1985 = vpack.c.b16 %v1521, %v1517
    %v1986 = vpack.c.b16 %v1522, %v1518
    %v1987 = vpack.c.b16 %v1523, %v1519
    %v1988 = vpack.c.b16 %v1524, %v1520
    %v1989 = vpack.c.b16 %v1529, %v1525
    %v1990 = vpack.c.b16 %v1530, %v1526
    %v1991 = vpack.c.b16 %v1531, %v1527
    %v1992 = vpack.c.b16 %v1532, %v1528
    %v1993 = vpack.c.b16 %v1537, %v1533
    %v1994 = vpack.c.b16 %v1538, %v1534
    %v1995 = vpack.c.b16 %v1539, %v1535
    %v1996 = vpack.c.b16 %v1540, %v1536
    %v1997 = vpack.c.b16 %v1545, %v1541
    %v1998 = vpack.c.b16 %v1546, %v1542
    %v1999 = vpack.c.b16 %v1547, %v1543
    %v2000 = vpack.c.b16 %v1548, %v1544
    %v2001 = vpack.c.b16 %v1553, %v1549
    %v2002 = vpack.c.b16 %v1554, %v1550
    %v2003 = vpack.c.b16 %v1555, %v1551
    %v2004 = vpack.c.b16 %v1556, %v1552
    %v2005 = vpack.c.b16 %v1561, %v1557
    %v2006 = vpack.c.b16 %v1562, %v1558
    %v2007 = vpack.c.b16 %v1563, %v1559
    %v2008 = vpack.c.b16 %v1564, %v1560
    %v2009 = vpack.c.b16 %v1569, %v1565
    %v2010 = vpack.c.b16 %v1570, %v1566
    %v2011 = vpack.c.b16 %v1571, %v1567
    %v2012 = vpack.c.b16 %v1572, %v1568
    %v2013 = vpack.c.b16 %v1577, %v1573
    %v2014 = vpack.c.b16 %v1578, %v1574
    %v2015 = vpack.c.b16 %v1579, %v1575
    %v2016 = vpack.c.b16 %v1580, %v1576
    %v2017 = vpack.c.b16 %v1585, %v1581
    %v2018 = vpack.c.b16 %v1586, %v1582
    %v2019 = vpack.c.b16 %v1587, %v1583
    %v2020 = vpack.c.b16 %v1588, %v1584
    %v2021 = vpack.c.b16 %v1593, %v1589
    %v2022 = vpack.c.b16 %v1594, %v1590
    %v2023 = vpack.c.b16 %v1595, %v1591
    %v2024 = vpack.c.b16 %v1596, %v1592
    %v2025 = vpack.c.b16 %v1601, %v1597
    %v2026 = vpack.c.b16 %v1602, %v1598
    %v2027 = vpack.c.b16 %v1603, %v1599
    %v2028 = vpack.c.b16 %v1604, %v1600
    %v2029 = vpack.c.b16 %v1609, %v1605
    %v2030 = vpack.c.b16 %v1610, %v1606
    %v2031 = vpack.c.b16 %v1611, %v1607
    %v2032 = vpack.c.b16 %v1612, %v1608
    %v2033 = vpack.c.b16 %v1617, %v1613
    %v2034 = vpack.c.b16 %v1618, %v1614
    %v2035 = vpack.c.b16 %v1619, %v1615
    %v2036 = vpack.c.b16 %v1620, %v1616
    %v2037 = vpack.c.b16 %v1625, %v1621
    %v2038 = vpack.c.b16 %v1626, %v1622
    %v2039 = vpack.c.b16 %v1627, %v1623
    %v2040 = vpack.c.b16 %v1628, %v1624
    %v2041 = vpack.c.b16 %v1633, %v1629
    %v2042 = vpack.c.b16 %v1634, %v1630
    %v2043 = vpack.c.b16 %v1635, %v1631
    %v2044 = vpack.c.b16 %v1636, %v1632
    %v2045 = vpack.c.b16 %v1641, %v1637
    %v2046 = vpack.c.b16 %v1642, %v1638
    %v2047 = vpack.c.b16 %v1643, %v1639
    %v2048 = vpack.c.b16 %v1644, %v1640
    %v2049 = vpack.c.b16 %v1649, %v1645
    %v2050 = vpack.c.b16 %v1650, %v1646
    %v2051 = vpack.c.b16 %v1651, %v1647
    %v2052 = vpack.c.b16 %v1652, %v1648
    %v2053 = vpack.c.b16 %v1657, %v1653
    %v2054 = vpack.c.b16 %v1658, %v1654
    %v2055 = vpack.c.b16 %v1659, %v1655
    %v2056 = vpack.c.b16 %v1660, %v1656
    %v2057 = vpack.c.b16 %v1665, %v1661
    %v2058 = vpack.c.b16 %v1666, %v1662
    %v2059 = vpack.c.b16 %v1667, %v1663
    %v2060 = vpack.c.b16 %v1668, %v1664
    %v2061 = vpack.c.b16 %v1673, %v1669
    %v2062 = vpack.c.b16 %v1674, %v1670
    %v2063 = vpack.c.b16 %v1675, %v1671
    %v2064 = vpack.c.b16 %v1676, %v1672
    %v2065 = vpack.c.b16 %v1681, %v1677
    %v2066 = vpack.c.b16 %v1682, %v1678
    %v2067 = vpack.c.b16 %v1683, %v1679
    %v2068 = vpack.c.b16 %v1684, %v1680
    %2453 = vmatprep.subr.bf16.mxu0 %v1686
    %2454 = vmatpush1.bf16.msra.mxu0 %v1685
    %2455 = vmatprep.subr.bf16.mxu0 %v1690
    %2456 = vmatpush1.bf16.msra.mxu0 %v1689
    %2457 = vmatprep.subr.bf16.mxu0 %v1694
    %2458 = vmatpush1.bf16.msra.mxu0 %v1693
    %2459 = vmatprep.subr.bf16.mxu0 %v1698
    %2460 = vmatpush1.bf16.msra.mxu0 %v1697
    %2461 = vmatprep.subr.bf16.mxu0 %v1702
    %2462 = vmatpush1.bf16.msra.mxu0 %v1701
    %2463 = vmatprep.subr.bf16.mxu0 %v1706
    %2464 = vmatpush1.bf16.msra.mxu0 %v1705
    %2465 = vmatprep.subr.bf16.mxu0 %v1710
    %2466 = vmatpush1.bf16.msra.mxu0 %v1709
    %2467 = vmatprep.subr.bf16.mxu0 %v1714
    %2468 = vmatpush1.bf16.msra.mxu0 %v1713
    %2469 = vmatprep.subr.bf16.mxu0 %v1718
    %2470 = vmatpush1.bf16.msra.mxu0 %v1717
    %2471 = vmatprep.subr.bf16.mxu0 %v1722
    %2472 = vmatpush1.bf16.msra.mxu0 %v1721
    %2473 = vmatprep.subr.bf16.mxu0 %v1726
    %2474 = vmatpush1.bf16.msra.mxu0 %v1725
    %2475 = vmatprep.subr.bf16.mxu0 %v1730
    %2476 = vmatpush1.bf16.msra.mxu0 %v1729
    %2477 = vmatprep.subr.bf16.mxu0 %v1734
    %2478 = vmatpush1.bf16.msra.mxu0 %v1733
    %2479 = vmatprep.subr.bf16.mxu0 %v1738
    %2480 = vmatpush1.bf16.msra.mxu0 %v1737
    %2481 = vmatprep.subr.bf16.mxu0 %v1742
    %2482 = vmatpush1.bf16.msra.mxu0 %v1741
    %2483 = vmatprep.subr.bf16.mxu0 %v1746
    %2484 = vmatpush1.bf16.msra.mxu0 %v1745
    %2485 = vmatprep.mubr.bf16.mxu0 %v116
    %2486 = vmatmul.mubr.bf16.gmra.mrb[0].mxu0 %v115
    %v2487 = vpop.f32.mrb[0].mxu0
    %v2488 = vadd.f32 %v516, %v2487
    %v2489 = vpop.f32.mrb[0].mxu0
    %v2490 = vadd.f32 %v520, %v2489
    %v2491 = vpop.f32.mrb[0].mxu0
    %v2492 = vpop.f32.mrb[0].mxu0
    %2493 = vdwg.mxu0
    %2494 = vmatprep.subr.bf16.mxu0 %v1750
    %2495 = vmatpush1.bf16.msra.mxu0 %v1749
    %2496 = vmatprep.subr.bf16.mxu0 %v1754
    %2497 = vmatpush1.bf16.msra.mxu0 %v1753
    %2498 = vmatprep.subr.bf16.mxu0 %v1758
    %2499 = vmatpush1.bf16.msra.mxu0 %v1757
    %2500 = vmatprep.subr.bf16.mxu0 %v1762
    %2501 = vmatpush1.bf16.msra.mxu0 %v1761
    %2502 = vmatprep.subr.bf16.mxu0 %v1766
    %2503 = vmatpush1.bf16.msra.mxu0 %v1765
    %2504 = vmatprep.subr.bf16.mxu0 %v1770
    %2505 = vmatpush1.bf16.msra.mxu0 %v1769
    %2506 = vmatprep.subr.bf16.mxu0 %v1774
    %2507 = vmatpush1.bf16.msra.mxu0 %v1773
    %2508 = vmatprep.subr.bf16.mxu0 %v1778
    %2509 = vmatpush1.bf16.msra.mxu0 %v1777
    %2510 = vmatprep.subr.bf16.mxu0 %v1782
    %2511 = vmatpush1.bf16.msra.mxu0 %v1781
    %2512 = vmatprep.subr.bf16.mxu0 %v1786
    %2513 = vmatpush1.bf16.msra.mxu0 %v1785
    %2514 = vmatprep.subr.bf16.mxu0 %v1790
    %2515 = vmatpush1.bf16.msra.mxu0 %v1789
    %2516 = vmatprep.subr.bf16.mxu0 %v1794
    %2517 = vmatpush1.bf16.msra.mxu0 %v1793
    %2518 = vmatprep.subr.bf16.mxu0 %v1798
    %2519 = vmatpush1.bf16.msra.mxu0 %v1797
    %2520 = vmatprep.subr.bf16.mxu0 %v1802
    %2521 = vmatpush1.bf16.msra.mxu0 %v1801
    %2522 = vmatprep.subr.bf16.mxu0 %v1806
    %2523 = vmatpush1.bf16.msra.mxu0 %v1805
    %2524 = vmatprep.subr.bf16.mxu0 %v1810
    %2525 = vmatpush1.bf16.msra.mxu0 %v1809
    %2526 = vmatprep.mubr.bf16.mxu0 %v118
    %2527 = vmatmul.mubr.bf16.gmra.mrb[0].mxu0 %v117
    %v2528 = vpop.f32.mrb[0].mxu0
    %v2529 = vadd.f32 %v2488, %v2528
    %v2530 = vpop.f32.mrb[0].mxu0
    %v2531 = vadd.f32 %v2490, %v2530
    %v2532 = vpop.f32.mrb[0].mxu0
    %v2533 = vpop.f32.mrb[0].mxu0
    %2534 = vdwg.mxu0
    %2535 = vmatprep.subr.bf16.mxu0 %v1814
    %2536 = vmatpush1.bf16.msra.mxu0 %v1813
    %2537 = vmatprep.subr.bf16.mxu0 %v1818
    %2538 = vmatpush1.bf16.msra.mxu0 %v1817
    %2539 = vmatprep.subr.bf16.mxu0 %v1822
    %2540 = vmatpush1.bf16.msra.mxu0 %v1821
    %2541 = vmatprep.subr.bf16.mxu0 %v1826
    %2542 = vmatpush1.bf16.msra.mxu0 %v1825
    %2543 = vmatprep.subr.bf16.mxu0 %v1830
    %2544 = vmatpush1.bf16.msra.mxu0 %v1829
    %2545 = vmatprep.subr.bf16.mxu0 %v1834
    %2546 = vmatpush1.bf16.msra.mxu0 %v1833
    %2547 = vmatprep.subr.bf16.mxu0 %v1838
    %2548 = vmatpush1.bf16.msra.mxu0 %v1837
    %2549 = vmatprep.subr.bf16.mxu0 %v1842
    %2550 = vmatpush1.bf16.msra.mxu0 %v1841
    %2551 = vmatprep.subr.bf16.mxu0 %v1846
    %2552 = vmatpush1.bf16.msra.mxu0 %v1845
    %2553 = vmatprep.subr.bf16.mxu0 %v1850
    %2554 = vmatpush1.bf16.msra.mxu0 %v1849
    %2555 = vmatprep.subr.bf16.mxu0 %v1854
    %2556 = vmatpush1.bf16.msra.mxu0 %v1853
    %2557 = vmatprep.subr.bf16.mxu0 %v1858
    %2558 = vmatpush1.bf16.msra.mxu0 %v1857
    %2559 = vmatprep.subr.bf16.mxu0 %v1862
    %2560 = vmatpush1.bf16.msra.mxu0 %v1861
    %2561 = vmatprep.subr.bf16.mxu0 %v1866
    %2562 = vmatpush1.bf16.msra.mxu0 %v1865
    %2563 = vmatprep.subr.bf16.mxu0 %v1870
    %2564 = vmatpush1.bf16.msra.mxu0 %v1869
    %2565 = vmatprep.subr.bf16.mxu0 %v1874
    %2566 = vmatpush1.bf16.msra.mxu0 %v1873
    %2567 = vmatprep.mubr.bf16.mxu0 %v120
    %2568 = vmatmul.mubr.bf16.gmra.mrb[0].mxu0 %v119
    %v2569 = vpop.f32.mrb[0].mxu0
    %v2570 = vadd.f32 %v2529, %v2569
    %v2571 = vpop.f32.mrb[0].mxu0
    %v2572 = vadd.f32 %v2531, %v2571
    %v2573 = vpop.f32.mrb[0].mxu0
    %v2574 = vpop.f32.mrb[0].mxu0
    %2575 = vdwg.mxu0
    %2576 = vmatprep.subr.bf16.mxu0 %v1878
    %2577 = vmatpush1.bf16.msra.mxu0 %v1877
    %2578 = vmatprep.subr.bf16.mxu0 %v1882
    %2579 = vmatpush1.bf16.msra.mxu0 %v1881
    %2580 = vmatprep.subr.bf16.mxu0 %v1886
    %2581 = vmatpush1.bf16.msra.mxu0 %v1885
    %2582 = vmatprep.subr.bf16.mxu0 %v1890
    %2583 = vmatpush1.bf16.msra.mxu0 %v1889
    %2584 = vmatprep.subr.bf16.mxu0 %v1894
    %2585 = vmatpush1.bf16.msra.mxu0 %v1893
    %2586 = vmatprep.subr.bf16.mxu0 %v1898
    %2587 = vmatpush1.bf16.msra.mxu0 %v1897
    %2588 = vmatprep.subr.bf16.mxu0 %v1902
    %2589 = vmatpush1.bf16.msra.mxu0 %v1901
    %2590 = vmatprep.subr.bf16.mxu0 %v1906
    %2591 = vmatpush1.bf16.msra.mxu0 %v1905
    %2592 = vmatprep.subr.bf16.mxu0 %v1910
    %2593 = vmatpush1.bf16.msra.mxu0 %v1909
    %2594 = vmatprep.subr.bf16.mxu0 %v1914
    %2595 = vmatpush1.bf16.msra.mxu0 %v1913
    %2596 = vmatprep.subr.bf16.mxu0 %v1918
    %2597 = vmatpush1.bf16.msra.mxu0 %v1917
    %2598 = vmatprep.subr.bf16.mxu0 %v1922
    %2599 = vmatpush1.bf16.msra.mxu0 %v1921
    %2600 = vmatprep.subr.bf16.mxu0 %v1926
    %2601 = vmatpush1.bf16.msra.mxu0 %v1925
    %2602 = vmatprep.subr.bf16.mxu0 %v1930
    %2603 = vmatpush1.bf16.msra.mxu0 %v1929
    %2604 = vmatprep.subr.bf16.mxu0 %v1934
    %2605 = vmatpush1.bf16.msra.mxu0 %v1933
    %2606 = vmatprep.subr.bf16.mxu0 %v1938
    %2607 = vmatpush1.bf16.msra.mxu0 %v1937
    %2608 = vmatprep.mubr.bf16.mxu0 %v122
    %2609 = vmatmul.mubr.bf16.gmra.mrb[0].mxu0 %v121
    %v2610 = vpop.f32.mrb[0].mxu0
    %v2611 = vadd.f32 %v2570, %v2610
    %v2612 = vpop.f32.mrb[0].mxu0
    %v2613 = vadd.f32 %v2572, %v2612
    %v2614 = vpop.f32.mrb[0].mxu0
    %v2615 = vpop.f32.mrb[0].mxu0
    %2616 = vdwg.mxu0
    %2617 = vmatprep.subr.bf16.mxu0 %v1942
    %2618 = vmatpush1.bf16.msra.mxu0 %v1941
    %2619 = vmatprep.subr.bf16.mxu0 %v1946
    %2620 = vmatpush1.bf16.msra.mxu0 %v1945
    %2621 = vmatprep.subr.bf16.mxu0 %v1950
    %2622 = vmatpush1.bf16.msra.mxu0 %v1949
    %2623 = vmatprep.subr.bf16.mxu0 %v1954
    %2624 = vmatpush1.bf16.msra.mxu0 %v1953
    %2625 = vmatprep.subr.bf16.mxu0 %v1958
    %2626 = vmatpush1.bf16.msra.mxu0 %v1957
    %2627 = vmatprep.subr.bf16.mxu0 %v1962
    %2628 = vmatpush1.bf16.msra.mxu0 %v1961
    %2629 = vmatprep.subr.bf16.mxu0 %v1966
    %2630 = vmatpush1.bf16.msra.mxu0 %v1965
    %2631 = vmatprep.subr.bf16.mxu0 %v1970
    %2632 = vmatpush1.bf16.msra.mxu0 %v1969
    %2633 = vmatprep.subr.bf16.mxu0 %v1974
    %2634 = vmatpush1.bf16.msra.mxu0 %v1973
    %2635 = vmatprep.subr.bf16.mxu0 %v1978
    %2636 = vmatpush1.bf16.msra.mxu0 %v1977
    %2637 = vmatprep.subr.bf16.mxu0 %v1982
    %2638 = vmatpush1.bf16.msra.mxu0 %v1981
    %2639 = vmatprep.subr.bf16.mxu0 %v1986
    %2640 = vmatpush1.bf16.msra.mxu0 %v1985
    %2641 = vmatprep.subr.bf16.mxu0 %v1990
    %2642 = vmatpush1.bf16.msra.mxu0 %v1989
    %2643 = vmatprep.subr.bf16.mxu0 %v1994
    %2644 = vmatpush1.bf16.msra.mxu0 %v1993
    %2645 = vmatprep.subr.bf16.mxu0 %v1998
    %2646 = vmatpush1.bf16.msra.mxu0 %v1997
    %2647 = vmatprep.subr.bf16.mxu0 %v2002
    %2648 = vmatpush1.bf16.msra.mxu0 %v2001
    %2649 = vmatprep.mubr.bf16.mxu0 %v124
    %2650 = vmatmul.mubr.bf16.gmra.mrb[0].mxu0 %v123
    %v2651 = vpop.f32.mrb[0].mxu0
    %v2652 = vadd.f32 %v2611, %v2651
    %v2653 = vpop.f32.mrb[0].mxu0
    %v2654 = vadd.f32 %v2613, %v2653
    %v2655 = vpop.f32.mrb[0].mxu0
    %v2656 = vpop.f32.mrb[0].mxu0
    %2657 = vdwg.mxu0
    %2658 = vmatprep.subr.bf16.mxu0 %v2006
    %2659 = vmatpush1.bf16.msra.mxu0 %v2005
    %2660 = vmatprep.subr.bf16.mxu0 %v2010
    %2661 = vmatpush1.bf16.msra.mxu0 %v2009
    %2662 = vmatprep.subr.bf16.mxu0 %v2014
    %2663 = vmatpush1.bf16.msra.mxu0 %v2013
    %2664 = vmatprep.subr.bf16.mxu0 %v2018
    %2665 = vmatpush1.bf16.msra.mxu0 %v2017
    %2666 = vmatprep.subr.bf16.mxu0 %v2022
    %2667 = vmatpush1.bf16.msra.mxu0 %v2021
    %2668 = vmatprep.subr.bf16.mxu0 %v2026
    %2669 = vmatpush1.bf16.msra.mxu0 %v2025
    %2670 = vmatprep.subr.bf16.mxu0 %v2030
    %2671 = vmatpush1.bf16.msra.mxu0 %v2029
    %2672 = vmatprep.subr.bf16.mxu0 %v2034
    %2673 = vmatpush1.bf16.msra.mxu0 %v2033
    %2674 = vmatprep.subr.bf16.mxu0 %v2038
    %2675 = vmatpush1.bf16.msra.mxu0 %v2037
    %2676 = vmatprep.subr.bf16.mxu0 %v2042
    %2677 = vmatpush1.bf16.msra.mxu0 %v2041
    %2678 = vmatprep.subr.bf16.mxu0 %v2046
    %2679 = vmatpush1.bf16.msra.mxu0 %v2045
    %2680 = vmatprep.subr.bf16.mxu0 %v2050
    %2681 = vmatpush1.bf16.msra.mxu0 %v2049
    %2682 = vmatprep.subr.bf16.mxu0 %v2054
    %2683 = vmatpush1.bf16.msra.mxu0 %v2053
    %2684 = vmatprep.subr.bf16.mxu0 %v2058
    %2685 = vmatpush1.bf16.msra.mxu0 %v2057
    %2686 = vmatprep.subr.bf16.mxu0 %v2062
    %2687 = vmatpush1.bf16.msra.mxu0 %v2061
    %2688 = vmatprep.subr.bf16.mxu0 %v2066
    %2689 = vmatpush1.bf16.msra.mxu0 %v2065
    %2690 = vmatprep.mubr.bf16.mxu0 %v126
    %2691 = vmatmul.mubr.bf16.gmra.mrb[0].mxu0 %v125
    %v2692 = vpop.f32.mrb[0].mxu0
    %v2693 = vadd.f32 %v2652, %v2692
    %v2694 = vpop.f32.mrb[0].mxu0
    %v2695 = vadd.f32 %v2654, %v2694
    %v2696 = vpop.f32.mrb[0].mxu0
    %v2697 = vpop.f32.mrb[0].mxu0
    %2698 = vdwg.mxu0
    %2699 = vmatprep.subr.bf16.mxu0 %v1688
    %2700 = vmatpush1.bf16.msra.mxu0 %v1687
    %2701 = vmatprep.subr.bf16.mxu0 %v1692
    %2702 = vmatpush1.bf16.msra.mxu0 %v1691
    %2703 = vmatprep.subr.bf16.mxu0 %v1696
    %2704 = vmatpush1.bf16.msra.mxu0 %v1695
    %2705 = vmatprep.subr.bf16.mxu0 %v1700
    %2706 = vmatpush1.bf16.msra.mxu0 %v1699
    %2707 = vmatprep.subr.bf16.mxu0 %v1704
    %2708 = vmatpush1.bf16.msra.mxu0 %v1703
    %2709 = vmatprep.subr.bf16.mxu0 %v1708
    %2710 = vmatpush1.bf16.msra.mxu0 %v1707
    %2711 = vmatprep.subr.bf16.mxu0 %v1712
    %2712 = vmatpush1.bf16.msra.mxu0 %v1711
    %2713 = vmatprep.subr.bf16.mxu0 %v1716
    %2714 = vmatpush1.bf16.msra.mxu0 %v1715
    %2715 = vmatprep.subr.bf16.mxu0 %v1720
    %2716 = vmatpush1.bf16.msra.mxu0 %v1719
    %2717 = vmatprep.subr.bf16.mxu0 %v1724
    %2718 = vmatpush1.bf16.msra.mxu0 %v1723
    %2719 = vmatprep.subr.bf16.mxu0 %v1728
    %2720 = vmatpush1.bf16.msra.mxu0 %v1727
    %2721 = vmatprep.subr.bf16.mxu0 %v1732
    %2722 = vmatpush1.bf16.msra.mxu0 %v1731
    %2723 = vmatprep.subr.bf16.mxu0 %v1736
    %2724 = vmatpush1.bf16.msra.mxu0 %v1735
    %2725 = vmatprep.subr.bf16.mxu0 %v1740
    %2726 = vmatpush1.bf16.msra.mxu0 %v1739
    %2727 = vmatprep.subr.bf16.mxu0 %v1744
    %2728 = vmatpush1.bf16.msra.mxu0 %v1743
    %2729 = vmatprep.subr.bf16.mxu0 %v1748
    %2730 = vmatpush1.bf16.msra.mxu0 %v1747
    %2731 = vmatprep.mubr.bf16.mxu0 %v116
    %2732 = vmatmul.mubr.bf16.gmra.mrb[0].mxu0 %v115
    %v2733 = vpop.f32.mrb[0].mxu0
    %v2734 = vadd.f32 %v524, %v2733
    %v2735 = vpop.f32.mrb[0].mxu0
    %v2736 = vadd.f32 %v528, %v2735
    %v2737 = vpop.f32.mrb[0].mxu0
    %v2738 = vpop.f32.mrb[0].mxu0
    %2739 = vdwg.mxu0
    %2740 = vmatprep.subr.bf16.mxu0 %v1752
    %2741 = vmatpush1.bf16.msra.mxu0 %v1751
    %2742 = vmatprep.subr.bf16.mxu0 %v1756
    %2743 = vmatpush1.bf16.msra.mxu0 %v1755
    %2744 = vmatprep.subr.bf16.mxu0 %v1760
    %2745 = vmatpush1.bf16.msra.mxu0 %v1759
    %2746 = vmatprep.subr.bf16.mxu0 %v1764
    %2747 = vmatpush1.bf16.msra.mxu0 %v1763
    %2748 = vmatprep.subr.bf16.mxu0 %v1768
    %2749 = vmatpush1.bf16.msra.mxu0 %v1767
    %2750 = vmatprep.subr.bf16.mxu0 %v1772
    %2751 = vmatpush1.bf16.msra.mxu0 %v1771
    %2752 = vmatprep.subr.bf16.mxu0 %v1776
    %2753 = vmatpush1.bf16.msra.mxu0 %v1775
    %2754 = vmatprep.subr.bf16.mxu0 %v1780
    %2755 = vmatpush1.bf16.msra.mxu0 %v1779
    %2756 = vmatprep.subr.bf16.mxu0 %v1784
    %2757 = vmatpush1.bf16.msra.mxu0 %v1783
    %2758 = vmatprep.subr.bf16.mxu0 %v1788
    %2759 = vmatpush1.bf16.msra.mxu0 %v1787
    %2760 = vmatprep.subr.bf16.mxu0 %v1792
    %2761 = vmatpush1.bf16.msra.mxu0 %v1791
    %2762 = vmatprep.subr.bf16.mxu0 %v1796
    %2763 = vmatpush1.bf16.msra.mxu0 %v1795
    %2764 = vmatprep.subr.bf16.mxu0 %v1800
    %2765 = vmatpush1.bf16.msra.mxu0 %v1799
    %2766 = vmatprep.subr.bf16.mxu0 %v1804
    %2767 = vmatpush1.bf16.msra.mxu0 %v1803
    %2768 = vmatprep.subr.bf16.mxu0 %v1808
    %2769 = vmatpush1.bf16.msra.mxu0 %v1807
    %2770 = vmatprep.subr.bf16.mxu0 %v1812
    %2771 = vmatpush1.bf16.msra.mxu0 %v1811
    %2772 = vmatprep.mubr.bf16.mxu0 %v118
    %2773 = vmatmul.mubr.bf16.gmra.mrb[0].mxu0 %v117
    %v2774 = vpop.f32.mrb[0].mxu0
    %v2775 = vadd.f32 %v2734, %v2774
    %v2776 = vpop.f32.mrb[0].mxu0
    %v2777 = vadd.f32 %v2736, %v2776
    %v2778 = vpop.f32.mrb[0].mxu0
    %v2779 = vpop.f32.mrb[0].mxu0
    %2780 = vdwg.mxu0
    %2781 = vmatprep.subr.bf16.mxu0 %v1816
    %2782 = vmatpush1.bf16.msra.mxu0 %v1815
    %2783 = vmatprep.subr.bf16.mxu0 %v1820
    %2784 = vmatpush1.bf16.msra.mxu0 %v1819
    %2785 = vmatprep.subr.bf16.mxu0 %v1824
    %2786 = vmatpush1.bf16.msra.mxu0 %v1823
    %2787 = vmatprep.subr.bf16.mxu0 %v1828
    %2788 = vmatpush1.bf16.msra.mxu0 %v1827
    %2789 = vmatprep.subr.bf16.mxu0 %v1832
    %2790 = vmatpush1.bf16.msra.mxu0 %v1831
    %2791 = vmatprep.subr.bf16.mxu0 %v1836
    %2792 = vmatpush1.bf16.msra.mxu0 %v1835
    %2793 = vmatprep.subr.bf16.mxu0 %v1840
    %2794 = vmatpush1.bf16.msra.mxu0 %v1839
    %2795 = vmatprep.subr.bf16.mxu0 %v1844
    %2796 = vmatpush1.bf16.msra.mxu0 %v1843
    %2797 = vmatprep.subr.bf16.mxu0 %v1848
    %2798 = vmatpush1.bf16.msra.mxu0 %v1847
    %2799 = vmatprep.subr.bf16.mxu0 %v1852
    %2800 = vmatpush1.bf16.msra.mxu0 %v1851
    %2801 = vmatprep.subr.bf16.mxu0 %v1856
    %2802 = vmatpush1.bf16.msra.mxu0 %v1855
    %2803 = vmatprep.subr.bf16.mxu0 %v1860
    %2804 = vmatpush1.bf16.msra.mxu0 %v1859
    %2805 = vmatprep.subr.bf16.mxu0 %v1864
    %2806 = vmatpush1.bf16.msra.mxu0 %v1863
    %2807 = vmatprep.subr.bf16.mxu0 %v1868
    %2808 = vmatpush1.bf16.msra.mxu0 %v1867
    %2809 = vmatprep.subr.bf16.mxu0 %v1872
    %2810 = vmatpush1.bf16.msra.mxu0 %v1871
    %2811 = vmatprep.subr.bf16.mxu0 %v1876
    %2812 = vmatpush1.bf16.msra.mxu0 %v1875
    %2813 = vmatprep.mubr.bf16.mxu0 %v120
    %2814 = vmatmul.mubr.bf16.gmra.mrb[0].mxu0 %v119
    %v2815 = vpop.f32.mrb[0].mxu0
    %v2816 = vadd.f32 %v2775, %v2815
    %v2817 = vpop.f32.mrb[0].mxu0
    %v2818 = vadd.f32 %v2777, %v2817
    %v2819 = vpop.f32.mrb[0].mxu0
    %v2820 = vpop.f32.mrb[0].mxu0
    %2821 = vdwg.mxu0
    %2822 = vmatprep.subr.bf16.mxu0 %v1880
    %2823 = vmatpush1.bf16.msra.mxu0 %v1879
    %2824 = vmatprep.subr.bf16.mxu0 %v1884
    %2825 = vmatpush1.bf16.msra.mxu0 %v1883
    %2826 = vmatprep.subr.bf16.mxu0 %v1888
    %2827 = vmatpush1.bf16.msra.mxu0 %v1887
    %2828 = vmatprep.subr.bf16.mxu0 %v1892
    %2829 = vmatpush1.bf16.msra.mxu0 %v1891
    %2830 = vmatprep.subr.bf16.mxu0 %v1896
    %2831 = vmatpush1.bf16.msra.mxu0 %v1895
    %2832 = vmatprep.subr.bf16.mxu0 %v1900
    %2833 = vmatpush1.bf16.msra.mxu0 %v1899
    %2834 = vmatprep.subr.bf16.mxu0 %v1904
    %2835 = vmatpush1.bf16.msra.mxu0 %v1903
    %2836 = vmatprep.subr.bf16.mxu0 %v1908
    %2837 = vmatpush1.bf16.msra.mxu0 %v1907
    %2838 = vmatprep.subr.bf16.mxu0 %v1912
    %2839 = vmatpush1.bf16.msra.mxu0 %v1911
    %2840 = vmatprep.subr.bf16.mxu0 %v1916
    %2841 = vmatpush1.bf16.msra.mxu0 %v1915
    %2842 = vmatprep.subr.bf16.mxu0 %v1920
    %2843 = vmatpush1.bf16.msra.mxu0 %v1919
    %2844 = vmatprep.subr.bf16.mxu0 %v1924
    %2845 = vmatpush1.bf16.msra.mxu0 %v1923
    %2846 = vmatprep.subr.bf16.mxu0 %v1928
    %2847 = vmatpush1.bf16.msra.mxu0 %v1927
    %2848 = vmatprep.subr.bf16.mxu0 %v1932
    %2849 = vmatpush1.bf16.msra.mxu0 %v1931
    %2850 = vmatprep.subr.bf16.mxu0 %v1936
    %2851 = vmatpush1.bf16.msra.mxu0 %v1935
    %2852 = vmatprep.subr.bf16.mxu0 %v1940
    %2853 = vmatpush1.bf16.msra.mxu0 %v1939
    %2854 = vmatprep.mubr.bf16.mxu0 %v122
    %2855 = vmatmul.mubr.bf16.gmra.mrb[0].mxu0 %v121
    %v2856 = vpop.f32.mrb[0].mxu0
    %v2857 = vadd.f32 %v2816, %v2856
    %v2858 = vpop.f32.mrb[0].mxu0
    %v2859 = vadd.f32 %v2818, %v2858
    %v2860 = vpop.f32.mrb[0].mxu0
    %v2861 = vpop.f32.mrb[0].mxu0
    %2862 = vdwg.mxu0
    %2863 = vmatprep.subr.bf16.mxu0 %v1944
    %2864 = vmatpush1.bf16.msra.mxu0 %v1943
    %2865 = vmatprep.subr.bf16.mxu0 %v1948
    %2866 = vmatpush1.bf16.msra.mxu0 %v1947
    %2867 = vmatprep.subr.bf16.mxu0 %v1952
    %2868 = vmatpush1.bf16.msra.mxu0 %v1951
    %2869 = vmatprep.subr.bf16.mxu0 %v1956
    %2870 = vmatpush1.bf16.msra.mxu0 %v1955
    %2871 = vmatprep.subr.bf16.mxu0 %v1960
    %2872 = vmatpush1.bf16.msra.mxu0 %v1959
    %2873 = vmatprep.subr.bf16.mxu0 %v1964
    %2874 = vmatpush1.bf16.msra.mxu0 %v1963
    %2875 = vmatprep.subr.bf16.mxu0 %v1968
    %2876 = vmatpush1.bf16.msra.mxu0 %v1967
    %2877 = vmatprep.subr.bf16.mxu0 %v1972
    %2878 = vmatpush1.bf16.msra.mxu0 %v1971
    %2879 = vmatprep.subr.bf16.mxu0 %v1976
    %2880 = vmatpush1.bf16.msra.mxu0 %v1975
    %2881 = vmatprep.subr.bf16.mxu0 %v1980
    %2882 = vmatpush1.bf16.msra.mxu0 %v1979
    %2883 = vmatprep.subr.bf16.mxu0 %v1984
    %2884 = vmatpush1.bf16.msra.mxu0 %v1983
    %2885 = vmatprep.subr.bf16.mxu0 %v1988
    %2886 = vmatpush1.bf16.msra.mxu0 %v1987
    %2887 = vmatprep.subr.bf16.mxu0 %v1992
    %2888 = vmatpush1.bf16.msra.mxu0 %v1991
    %2889 = vmatprep.subr.bf16.mxu0 %v1996
    %2890 = vmatpush1.bf16.msra.mxu0 %v1995
    %2891 = vmatprep.subr.bf16.mxu0 %v2000
    %2892 = vmatpush1.bf16.msra.mxu0 %v1999
    %2893 = vmatprep.subr.bf16.mxu0 %v2004
    %2894 = vmatpush1.bf16.msra.mxu0 %v2003
    %2895 = vmatprep.mubr.bf16.mxu0 %v124
    %2896 = vmatmul.mubr.bf16.gmra.mrb[0].mxu0 %v123
    %v2897 = vpop.f32.mrb[0].mxu0
    %v2898 = vadd.f32 %v2857, %v2897
    %v2899 = vpop.f32.mrb[0].mxu0
    %v2900 = vadd.f32 %v2859, %v2899
    %v2901 = vpop.f32.mrb[0].mxu0
    %v2902 = vpop.f32.mrb[0].mxu0
    %2903 = vdwg.mxu0
    %2904 = vmatprep.subr.bf16.mxu0 %v2008
    %2905 = vmatpush1.bf16.msra.mxu0 %v2007
    %2906 = vmatprep.subr.bf16.mxu0 %v2012
    %2907 = vmatpush1.bf16.msra.mxu0 %v2011
    %2908 = vmatprep.subr.bf16.mxu0 %v2016
    %2909 = vmatpush1.bf16.msra.mxu0 %v2015
    %2910 = vmatprep.subr.bf16.mxu0 %v2020
    %2911 = vmatpush1.bf16.msra.mxu0 %v2019
    %2912 = vmatprep.subr.bf16.mxu0 %v2024
    %2913 = vmatpush1.bf16.msra.mxu0 %v2023
    %2914 = vmatprep.subr.bf16.mxu0 %v2028
    %2915 = vmatpush1.bf16.msra.mxu0 %v2027
    %2916 = vmatprep.subr.bf16.mxu0 %v2032
    %2917 = vmatpush1.bf16.msra.mxu0 %v2031
    %2918 = vmatprep.subr.bf16.mxu0 %v2036
    %2919 = vmatpush1.bf16.msra.mxu0 %v2035
    %2920 = vmatprep.subr.bf16.mxu0 %v2040
    %2921 = vmatpush1.bf16.msra.mxu0 %v2039
    %2922 = vmatprep.subr.bf16.mxu0 %v2044
    %2923 = vmatpush1.bf16.msra.mxu0 %v2043
    %2924 = vmatprep.subr.bf16.mxu0 %v2048
    %2925 = vmatpush1.bf16.msra.mxu0 %v2047
    %2926 = vmatprep.subr.bf16.mxu0 %v2052
    %2927 = vmatpush1.bf16.msra.mxu0 %v2051
    %2928 = vmatprep.subr.bf16.mxu0 %v2056
    %2929 = vmatpush1.bf16.msra.mxu0 %v2055
    %2930 = vmatprep.subr.bf16.mxu0 %v2060
    %2931 = vmatpush1.bf16.msra.mxu0 %v2059
    %2932 = vmatprep.subr.bf16.mxu0 %v2064
    %2933 = vmatpush1.bf16.msra.mxu0 %v2063
    %2934 = vmatprep.subr.bf16.mxu0 %v2068
    %2935 = vmatpush1.bf16.msra.mxu0 %v2067
    %2936 = vmatprep.mubr.bf16.mxu0 %v126
    %2937 = vmatmul.mubr.bf16.gmra.mrb[0].mxu0 %v125
    %v2938 = vpop.f32.mrb[0].mxu0
    %v2939 = vadd.f32 %v2898, %v2938
    %v2940 = vpop.f32.mrb[0].mxu0
    %v2941 = vadd.f32 %v2900, %v2940
    %v2942 = vpop.f32.mrb[0].mxu0
    %v2943 = vpop.f32.mrb[0].mxu0
    %2944 = vdwg.mxu0
    %v2945 = vmax.f32 %v2693, 0.0
    %v2946 = vmax.f32 %v2695, 0.0
    %v2947 = vmax.f32 %v2939, 0.0
    %v2948 = vmax.f32 %v2941, 0.0
    %v2949 = vpack.c.bf16 %v2945, %v2945
    %v2950 = vpack.c.bf16 %v2946, %v2946
    %v2951 = vpack.c.bf16 %v2947, %v2947
    %v2952 = vpack.c.bf16 %v2948, %v2948
    %v2953 = vld [vmem:[#allocation8] sm:$0xf]
    %v2954 = vld [vmem:[#allocation8 + $0x4] sm:$0xf]
    %v2955 = vld [vmem:[#allocation8 + $0x8] sm:$0xf]
    %v2956 = vld [vmem:[#allocation8 + $0xc] sm:$0xf]
    %v2957 = vld [vmem:[#allocation8 + $0x10] sm:$0xf]
    %v2958 = vld [vmem:[#allocation8 + $0x14] sm:$0xf]
    %v2959 = vld [vmem:[#allocation8 + $0x18] sm:$0xf]
    %v2960 = vld [vmem:[#allocation8 + $0x1c] sm:$0xf]
    %v2961 = vld [vmem:[#allocation8 + $0x20] sm:$0xf]
    %v2962 = vld [vmem:[#allocation8 + $0x24] sm:$0xf]
    %v2963 = vld [vmem:[#allocation8 + $0x28] sm:$0xf]
    %v2964 = vld [vmem:[#allocation8 + $0x2c] sm:$0xf]
    %v2965 = vld [vmem:[#allocation8 + $0x30] sm:$0xf]
    %v2966 = vld [vmem:[#allocation8 + $0x34] sm:$0xf]
    %v2967 = vld [vmem:[#allocation8 + $0x38] sm:$0xf]
    %v2968 = vld [vmem:[#allocation8 + $0x3c] sm:$0xf]
    %v2969 = vld [vmem:[#allocation8 + $0x40] sm:$0xf]
    %v2970 = vld [vmem:[#allocation8 + $0x44] sm:$0xf]
    %v2971 = vld [vmem:[#allocation8 + $0x48] sm:$0xf]
    %v2972 = vld [vmem:[#allocation8 + $0x4c] sm:$0xf]
    %v2973 = vld [vmem:[#allocation8 + $0x50] sm:$0xf]
    %v2974 = vld [vmem:[#allocation8 + $0x54] sm:$0xf]
    %v2975 = vld [vmem:[#allocation8 + $0x58] sm:$0xf]
    %v2976 = vld [vmem:[#allocation8 + $0x5c] sm:$0xf]
    %v2977 = vld [vmem:[#allocation8 + $0x60] sm:$0xf]
    %v2978 = vld [vmem:[#allocation8 + $0x64] sm:$0xf]
    %v2979 = vld [vmem:[#allocation8 + $0x68] sm:$0xf]
    %v2980 = vld [vmem:[#allocation8 + $0x6c] sm:$0xf]
    %v2981 = vld [vmem:[#allocation8 + $0x70] sm:$0xf]
    %v2982 = vld [vmem:[#allocation8 + $0x74] sm:$0xf]
    %v2983 = vld [vmem:[#allocation8 + $0x78] sm:$0xf]
    %v2984 = vld [vmem:[#allocation8 + $0x7c] sm:$0xf]
    %v2985 = vld [vmem:[#allocation8 + $0x80] sm:$0xf]
    %v2986 = vld [vmem:[#allocation8 + $0x84] sm:$0xf]
    %v2987 = vld [vmem:[#allocation8 + $0x88] sm:$0xf]
    %v2988 = vld [vmem:[#allocation8 + $0x8c] sm:$0xf]
    %v2989 = vld [vmem:[#allocation8 + $0x90] sm:$0xf]
    %v2990 = vld [vmem:[#allocation8 + $0x94] sm:$0xf]
    %v2991 = vld [vmem:[#allocation8 + $0x98] sm:$0xf]
    %v2992 = vld [vmem:[#allocation8 + $0x9c] sm:$0xf]
    %v2993 = vld [vmem:[#allocation8 + $0xa0] sm:$0xf]
    %v2994 = vld [vmem:[#allocation8 + $0xa4] sm:$0xf]
    %v2995 = vld [vmem:[#allocation8 + $0xa8] sm:$0xf]
    %v2996 = vld [vmem:[#allocation8 + $0xac] sm:$0xf]
    %v2997 = vld [vmem:[#allocation8 + $0xb0] sm:$0xf]
    %v2998 = vld [vmem:[#allocation8 + $0xb4] sm:$0xf]
    %v2999 = vld [vmem:[#allocation8 + $0xb8] sm:$0xf]
    %v3000 = vld [vmem:[#allocation8 + $0xbc] sm:$0xf]
    %v3001 = vld [vmem:[#allocation8 + $0xc0] sm:$0xf]
    %v3002 = vld [vmem:[#allocation8 + $0xc4] sm:$0xf]
    %v3003 = vld [vmem:[#allocation8 + $0xc8] sm:$0xf]
    %v3004 = vld [vmem:[#allocation8 + $0xcc] sm:$0xf]
    %v3005 = vld [vmem:[#allocation8 + $0xd0] sm:$0xf]
    %v3006 = vld [vmem:[#allocation8 + $0xd4] sm:$0xf]
    %v3007 = vld [vmem:[#allocation8 + $0xd8] sm:$0xf]
    %v3008 = vld [vmem:[#allocation8 + $0xdc] sm:$0xf]
    %v3009 = vld [vmem:[#allocation8 + $0xe0] sm:$0xf]
    %v3010 = vld [vmem:[#allocation8 + $0xe4] sm:$0xf]
    %v3011 = vld [vmem:[#allocation8 + $0xe8] sm:$0xf]
    %v3012 = vld [vmem:[#allocation8 + $0xec] sm:$0xf]
    %v3013 = vld [vmem:[#allocation8 + $0xf0] sm:$0xf]
    %v3014 = vld [vmem:[#allocation8 + $0xf4] sm:$0xf]
    %v3015 = vld [vmem:[#allocation8 + $0xf8] sm:$0xf]
    %v3016 = vld [vmem:[#allocation8 + $0xfc] sm:$0xf]
    %v3017 = vld [vmem:[#allocation10] sm:$0x1]
    %v3019 = vlaneseq
    %v3020 = vshrl.u32 %v3019, 7
    %v3021 = vsub.s32 0, %v3020
    %v3022 = vrot.slane %v3017, %v3021
    %v3088 = vunpack.c.l.b16 %v2953
    %v3089 = vunpack.c.l.b16 %v2954
    %v3090 = vunpack.c.l.b16 %v2955
    %v3091 = vunpack.c.l.b16 %v2956
    %v3092 = vunpack.c.l.b16 %v2957
    %v3093 = vunpack.c.l.b16 %v2958
    %v3094 = vunpack.c.l.b16 %v2959
    %v3095 = vunpack.c.l.b16 %v2960
    %v3096 = vunpack.c.l.b16 %v2961
    %v3097 = vunpack.c.l.b16 %v2962
    %v3098 = vunpack.c.l.b16 %v2963
    %v3099 = vunpack.c.l.b16 %v2964
    %v3100 = vunpack.c.l.b16 %v2965
    %v3101 = vunpack.c.l.b16 %v2966
    %v3102 = vunpack.c.l.b16 %v2967
    %v3103 = vunpack.c.l.b16 %v2968
    %v3104 = vunpack.c.l.b16 %v2969
    %v3105 = vunpack.c.l.b16 %v2970
    %v3106 = vunpack.c.l.b16 %v2971
    %v3107 = vunpack.c.l.b16 %v2972
    %v3108 = vunpack.c.l.b16 %v2973
    %v3109 = vunpack.c.l.b16 %v2974
    %v3110 = vunpack.c.l.b16 %v2975
    %v3111 = vunpack.c.l.b16 %v2976
    %v3112 = vunpack.c.l.b16 %v2977
    %v3113 = vunpack.c.l.b16 %v2978
    %v3114 = vunpack.c.l.b16 %v2979
    %v3115 = vunpack.c.l.b16 %v2980
    %v3116 = vunpack.c.l.b16 %v2981
    %v3117 = vunpack.c.l.b16 %v2982
    %v3118 = vunpack.c.l.b16 %v2983
    %v3119 = vunpack.c.l.b16 %v2984
    %v3120 = vunpack.c.l.b16 %v2985
    %v3121 = vunpack.c.l.b16 %v2986
    %v3122 = vunpack.c.l.b16 %v2987
    %v3123 = vunpack.c.l.b16 %v2988
    %v3124 = vunpack.c.l.b16 %v2989
    %v3125 = vunpack.c.l.b16 %v2990
    %v3126 = vunpack.c.l.b16 %v2991
    %v3127 = vunpack.c.l.b16 %v2992
    %v3128 = vunpack.c.l.b16 %v2993
    %v3129 = vunpack.c.l.b16 %v2994
    %v3130 = vunpack.c.l.b16 %v2995
    %v3131 = vunpack.c.l.b16 %v2996
    %v3132 = vunpack.c.l.b16 %v2997
    %v3133 = vunpack.c.l.b16 %v2998
    %v3134 = vunpack.c.l.b16 %v2999
    %v3135 = vunpack.c.l.b16 %v3000
    %v3136 = vunpack.c.l.b16 %v3001
    %v3137 = vunpack.c.l.b16 %v3002
    %v3138 = vunpack.c.l.b16 %v3003
    %v3139 = vunpack.c.l.b16 %v3004
    %v3140 = vunpack.c.l.b16 %v3005
    %v3141 = vunpack.c.l.b16 %v3006
    %v3142 = vunpack.c.l.b16 %v3007
    %v3143 = vunpack.c.l.b16 %v3008
    %v3144 = vunpack.c.l.b16 %v3009
    %v3145 = vunpack.c.l.b16 %v3010
    %v3146 = vunpack.c.l.b16 %v3011
    %v3147 = vunpack.c.l.b16 %v3012
    %v3148 = vunpack.c.l.b16 %v3013
    %v3149 = vunpack.c.l.b16 %v3014
    %v3150 = vunpack.c.l.b16 %v3015
    %v3151 = vunpack.c.l.b16 %v3016
    %v3152 = vpack.c.b16 %v3089, %v3088
    %v3153 = vpack.c.b16 %v3091, %v3090
    %v3154 = vpack.c.b16 %v3093, %v3092
    %v3155 = vpack.c.b16 %v3095, %v3094
    %v3156 = vpack.c.b16 %v3097, %v3096
    %v3157 = vpack.c.b16 %v3099, %v3098
    %v3158 = vpack.c.b16 %v3101, %v3100
    %v3159 = vpack.c.b16 %v3103, %v3102
    %v3160 = vpack.c.b16 %v3105, %v3104
    %v3161 = vpack.c.b16 %v3107, %v3106
    %v3162 = vpack.c.b16 %v3109, %v3108
    %v3163 = vpack.c.b16 %v3111, %v3110
    %v3164 = vpack.c.b16 %v3113, %v3112
    %v3165 = vpack.c.b16 %v3115, %v3114
    %v3166 = vpack.c.b16 %v3117, %v3116
    %v3167 = vpack.c.b16 %v3119, %v3118
    %v3168 = vpack.c.b16 %v3121, %v3120
    %v3169 = vpack.c.b16 %v3123, %v3122
    %v3170 = vpack.c.b16 %v3125, %v3124
    %v3171 = vpack.c.b16 %v3127, %v3126
    %v3172 = vpack.c.b16 %v3129, %v3128
    %v3173 = vpack.c.b16 %v3131, %v3130
    %v3174 = vpack.c.b16 %v3133, %v3132
    %v3175 = vpack.c.b16 %v3135, %v3134
    %v3176 = vpack.c.b16 %v3137, %v3136
    %v3177 = vpack.c.b16 %v3139, %v3138
    %v3178 = vpack.c.b16 %v3141, %v3140
    %v3179 = vpack.c.b16 %v3143, %v3142
    %v3180 = vpack.c.b16 %v3145, %v3144
    %v3181 = vpack.c.b16 %v3147, %v3146
    %v3182 = vpack.c.b16 %v3149, %v3148
    %v3183 = vpack.c.b16 %v3151, %v3150
    %3216 = vmatprep.subr.bf16.mxu0 0
    %3217 = vmatpush1.bf16.msra.mxu0 %v3152
    %3218 = vmatprep.subr.bf16.mxu0 0
    %3219 = vmatpush1.bf16.msra.mxu0 %v3153
    %3220 = vmatprep.subr.bf16.mxu0 0
    %3221 = vmatpush1.bf16.msra.mxu0 %v3154
    %3222 = vmatprep.subr.bf16.mxu0 0
    %3223 = vmatpush1.bf16.msra.mxu0 %v3155
    %3224 = vmatprep.subr.bf16.mxu0 0
    %3225 = vmatpush1.bf16.msra.mxu0 %v3156
    %3226 = vmatprep.subr.bf16.mxu0 0
    %3227 = vmatpush1.bf16.msra.mxu0 %v3157
    %3228 = vmatprep.subr.bf16.mxu0 0
    %3229 = vmatpush1.bf16.msra.mxu0 %v3158
    %3230 = vmatprep.subr.bf16.mxu0 0
    %3231 = vmatpush1.bf16.msra.mxu0 %v3159
    %3232 = vmatprep.subr.bf16.mxu0 0
    %3233 = vmatpush1.bf16.msra.mxu0 %v3160
    %3234 = vmatprep.subr.bf16.mxu0 0
    %3235 = vmatpush1.bf16.msra.mxu0 %v3161
    %3236 = vmatprep.subr.bf16.mxu0 0
    %3237 = vmatpush1.bf16.msra.mxu0 %v3162
    %3238 = vmatprep.subr.bf16.mxu0 0
    %3239 = vmatpush1.bf16.msra.mxu0 %v3163
    %3240 = vmatprep.subr.bf16.mxu0 0
    %3241 = vmatpush1.bf16.msra.mxu0 %v3164
    %3242 = vmatprep.subr.bf16.mxu0 0
    %3243 = vmatpush1.bf16.msra.mxu0 %v3165
    %3244 = vmatprep.subr.bf16.mxu0 0
    %3245 = vmatpush1.bf16.msra.mxu0 %v3166
    %3246 = vmatprep.subr.bf16.mxu0 0
    %3247 = vmatpush1.bf16.msra.mxu0 %v3167
    %3248 = vmatprep.mubr.bf16.mxu0 %v2950
    %3249 = vmatmul.mubr.bf16.gmra.mrb[0].mxu0 %v2949
    %v3250 = vpop.f32.mrb[0].mxu0
    %v3251 = vadd.f32 %v3022, %v3250
    %v3252 = vpop.f32.mrb[0].mxu0
    %v3253 = vpop.f32.mrb[0].mxu0
    %v3254 = vpop.f32.mrb[0].mxu0
    %3255 = vdwg.mxu0
    %3256 = vmatprep.subr.bf16.mxu0 0
    %3257 = vmatpush1.bf16.msra.mxu0 %v3168
    %3258 = vmatprep.subr.bf16.mxu0 0
    %3259 = vmatpush1.bf16.msra.mxu0 %v3169
    %3260 = vmatprep.subr.bf16.mxu0 0
    %3261 = vmatpush1.bf16.msra.mxu0 %v3170
    %3262 = vmatprep.subr.bf16.mxu0 0
    %3263 = vmatpush1.bf16.msra.mxu0 %v3171
    %3264 = vmatprep.subr.bf16.mxu0 0
    %3265 = vmatpush1.bf16.msra.mxu0 %v3172
    %3266 = vmatprep.subr.bf16.mxu0 0
    %3267 = vmatpush1.bf16.msra.mxu0 %v3173
    %3268 = vmatprep.subr.bf16.mxu0 0
    %3269 = vmatpush1.bf16.msra.mxu0 %v3174
    %3270 = vmatprep.subr.bf16.mxu0 0
    %3271 = vmatpush1.bf16.msra.mxu0 %v3175
    %3272 = vmatprep.subr.bf16.mxu0 0
    %3273 = vmatpush1.bf16.msra.mxu0 %v3176
    %3274 = vmatprep.subr.bf16.mxu0 0
    %3275 = vmatpush1.bf16.msra.mxu0 %v3177
    %3276 = vmatprep.subr.bf16.mxu0 0
    %3277 = vmatpush1.bf16.msra.mxu0 %v3178
    %3278 = vmatprep.subr.bf16.mxu0 0
    %3279 = vmatpush1.bf16.msra.mxu0 %v3179
    %3280 = vmatprep.subr.bf16.mxu0 0
    %3281 = vmatpush1.bf16.msra.mxu0 %v3180
    %3282 = vmatprep.subr.bf16.mxu0 0
    %3283 = vmatpush1.bf16.msra.mxu0 %v3181
    %3284 = vmatprep.subr.bf16.mxu0 0
    %3285 = vmatpush1.bf16.msra.mxu0 %v3182
    %3286 = vmatprep.subr.bf16.mxu0 0
    %3287 = vmatpush1.bf16.msra.mxu0 %v3183
    %3288 = vmatprep.mubr.bf16.mxu0 %v2952
    %3289 = vmatmul.mubr.bf16.gmra.mrb[0].mxu0 %v2951
    %v3290 = vpop.f32.mrb[0].mxu0
    %v3291 = vadd.f32 %v3251, %v3290
    %v3292 = vpop.f32.mrb[0].mxu0
    %v3293 = vpop.f32.mrb[0].mxu0
    %v3294 = vpop.f32.mrb[0].mxu0
    %3295 = vdwg.mxu0
    %v3296 = vmax.f32 %v3291, 0.0
    %v3297 = vld [vmem:[#allocation11] sm:$0x1]
    %v3299 = vlaneseq
    %v3300 = vshrl.u32 %v3299, 7
    %v3301 = vsub.s32 0, %v3300
    %v3302 = vrot.slane %v3297, %v3301
    %v3304 = vmul.f32 %v3296, %v3302
    %3305 = vadd.xlane.f32.xlu0 %v3304
    %v3306 = vpop.xlane.xlu0 %3305
    %v3307 = vld [vmem:[#allocation2] sm:$0x1]
    %v3309 = vlaneseq
    %v3310 = vshrl.u32 %v3309, 7
    %v3311 = vsub.s32 0, %v3310
    %v3312 = vrot.slane %v3307, %v3311
    %v3314 = vadd.f32 %v3306, %v3312
    %vm3315 = vcmask 7168
    %3316 = vst.msk [vmem:[%s7] sm:$0xff] %vm3315, %v3314
    // Predicated region
    $region54: #{tpu_custom_call.1} parent=1 // pred_check
      _
    $region55: #{tpu_custom_call.1} parent=1 // pred_check_branch
      %3318 = sbr.rel (0) target = $region57
    $region56: #{tpu_custom_call.1} parent=1 // pred_region
      _
    $region57: #{tpu_custom_call.1} parent=1 // pred_fallthru
      _
    // Predicated region
    $region58: #{tpu_custom_call.1} parent=1 // pred_check
      _
    $region59: #{tpu_custom_call.1} parent=1 // pred_check_branch
      %3320 = sbr.rel (0) target = $region61
    $region60: #{tpu_custom_call.1} parent=1 // pred_region
      _
    $region61: #{tpu_custom_call.1} parent=1 // pred_fallthru
      _
    %3321 = vsyncpa [#allocation4], 1
    %3322 = vsyncpa [#allocation6], 1
    %3323 = vsyncpa [#allocation9], 1
    %3324 = vsyncpa [#allocation12], 1

</llo_original>
